<compile_context>
chip_gen: v7x
topology: tpu7x:2x2x1
jax: 0.10.0
libtpu: 0.0.40
codegen_flags: <defaults>
</compile_context>

<pallas_src>
import jax
import jax.numpy as jnp
from jax.experimental import pallas as pl
from jax.experimental.pallas import tpu as pltpu

POS_HIDDEN = 32   # pos_mlp_hidden_dim
ATTN_MULT = 2     # attn_mlp_hidden_mult


# ---------------------------------------------------------------------------
# Fused kernel: one (batch b, query-tile qi) program.
# ---------------------------------------------------------------------------
def _ptb_kernel(x_all_ref, x_q_ref, p_all_ref, p_q_ref,
                w1t_ref, b1_ref, wqt_ref, wkt_ref, wvt_ref,
                wp1t_ref, bp1_ref, wp2t_ref, bp2_ref,
                wa1t_ref, ba1_ref, wa2t_ref, ba2_ref,
                w3t_ref, b3_ref,
                z_ref, q_scr, aq_scr, agg_scr):
    f32, bf16 = jnp.float32, jnp.bfloat16

    x_all = x_all_ref[0]        # (N, d_in)  float32 : all points of batch b
    x_q = x_q_ref[0]            # (TQ, d_in)         : this program's query rows
    p_all = p_all_ref[0]        # (N, 3)
    p_q = p_q_ref[0]            # (TQ, 3)

    n = x_all.shape[0]
    tq = x_q.shape[0]

    def mm(a, w_ref):           # bf16 MXU operands, f32 accumulation
        return jnp.dot(a.astype(bf16), w_ref[...], preferred_element_type=f32)

    # ---- fused layer1 + q/k/v projections (everything stays in VMEM) ----
    y_all = mm(x_all, w1t_ref) + b1_ref[...]          # (N, d_h)
    y_q = mm(x_q, w1t_ref) + b1_ref[...]              # (TQ, d_h)  (query rows only)
    k = mm(y_all, wkt_ref)                            # (N, d_h)
    v = mm(y_all, wvt_ref)                            # (N, d_h)
    q_scr[...] = mm(y_q, wqt_ref)                     # (TQ, d_h)

    # pos_mlp layer 0 is affine, so split it across the subtraction:
    #   W (p_i - p_j) + b  ==  (W p_i) - (W p_j) + b   (avoids a (TQ, N, 3) tensor)
    aq_scr[...] = mm(p_q, wp1t_ref)                   # (TQ, POS_HIDDEN)
    a_k = mm(p_all, wp1t_ref)                         # (N, POS_HIDDEN)
    bp1 = bp1_ref[...]                                # (1, POS_HIDDEN)

    # ---- build (TQ*N, .) operands so the pos/attn MLPs run as tall MXU matmuls ----
    h_rows, qk_rows = [], []
    for i in range(tq):                               # static unroll over the query tile
        a_qi = aq_scr[pl.ds(i, 1), :]                 # (1, POS_HIDDEN)
        q_i = q_scr[pl.ds(i, 1), :]                   # (1, d_h)
        h_rows.append(jnp.maximum(a_qi - a_k + bp1, 0.0))   # (N, POS_HIDDEN)
        qk_rows.append(q_i - k)                               # (N, d_h)
    h_cat = jnp.concatenate(h_rows, axis=0)           # (TQ*N, POS_HIDDEN)
    qk_cat = jnp.concatenate(qk_rows, axis=0)         # (TQ*N, d_h)
    v_cat = jnp.concatenate([v] * tq, axis=0)         # (TQ*N, d_h)

    rpe = mm(h_cat, wp2t_ref) + bp2_ref[...]          # (TQ*N, d_h) relative positional emb.
    v_exp = v_cat + rpe                               # values + rel. pos. emb.
    s_h = jnp.maximum(mm(qk_cat + rpe, wa1t_ref) + ba1_ref[...], 0.0)   # (TQ*N, 2*d_h)
    sim = mm(s_h, wa2t_ref) + ba2_ref[...]            # (TQ*N, d_h)

    # ---- per-query softmax over the neighbor axis j (torch: sim.softmax(dim=-2)) ----
    for i in range(tq):                               # aligned static row-slices (N % 8 == 0)
        sim_i = sim[i * n:(i + 1) * n, :]             # (N, d_h)
        ve_i = v_exp[i * n:(i + 1) * n, :]
        m_i = jnp.max(sim_i, axis=0, keepdims=True)
        e_i = jnp.exp(sim_i - m_i)
        inv = pl.reciprocal(jnp.sum(e_i, axis=0, keepdims=True), approx=True)
        agg_scr[pl.ds(i, 1), :] = jnp.sum((e_i * inv) * ve_i, axis=0, keepdims=True)

    # ---- layer3 + residual: one lane-dense (TQ, d_out) store per program ----
    z_ref[0] = x_q + mm(agg_scr[...], w3t_ref) + b3_ref[...]


# ---------------------------------------------------------------------------
# Wrapper
# ---------------------------------------------------------------------------
def point_transformer_block(x, p, params, *, num_neighbors, q_tile=8):
    B, N, d_in = x.shape
    d_h = params["w1t"].shape[1]
    d_out = params["w3t"].shape[1]
    p_hid = params["wp1t"].shape[1]
    d_a = params["wa1t"].shape[1]

    assert d_in == d_out, "residual z = x + y requires d_out == d_in"
    assert num_neighbors >= N, "TODO(synk): KNN gather path (num_neighbors < N) not implemented"
    assert N % 8 == 0, "TODO(synk): ragged N (not a multiple of 8 sublanes) not implemented"
    tq = min(q_tile, N)
    assert N % tq == 0 and (tq % 8 == 0 or tq == N), "query tile must be 8-aligned and divide N"
    n_qt = N // tq

    # MXU operands in bf16 (halves weight DMA); biases stay f32 for the f32 accumulate path.
    bf16 = jnp.bfloat16
    wb = {k: (v.astype(bf16) if k.startswith("w") else v) for k, v in params.items()}

    full = lambda b, qi: (b, 0, 0)     # whole point set of batch b (keys / values / coords)
    qrow = lambda b, qi: (b, qi, 0)    # this program's query-row block
    wmap = lambda b, qi: (0, 0)        # weights: constant block -> no re-DMA between steps

    z = pl.pallas_call(
        _ptb_kernel,
        out_shape=jax.ShapeDtypeStruct((B, N, d_out), jnp.float32),
        grid_spec=pltpu.PrefetchScalarGridSpec(
            num_scalar_prefetch=0,
            grid=(B, n_qt),
            in_specs=[
                pl.BlockSpec((1, N, d_in), full),     # x: all points (for k/v)
                pl.BlockSpec((1, tq, d_in), qrow),    # x: query rows (q proj + residual)
                pl.BlockSpec((1, N, 3), full),        # p: all points
                pl.BlockSpec((1, tq, 3), qrow),       # p: query rows
                pl.BlockSpec((d_in, d_h), wmap),      # layer1 W^T (bf16)
                pl.BlockSpec((1, d_h), wmap),         # layer1 b
                pl.BlockSpec((d_h, d_h), wmap),       # to_q W^T
                pl.BlockSpec((d_h, d_h), wmap),       # to_k W^T
                pl.BlockSpec((d_h, d_h), wmap),       # to_v W^T
                pl.BlockSpec((3, p_hid), wmap),       # pos_mlp W1^T
                pl.BlockSpec((1, p_hid), wmap),       # pos_mlp b1
                pl.BlockSpec((p_hid, d_h), wmap),     # pos_mlp W2^T
                pl.BlockSpec((1, d_h), wmap),         # pos_mlp b2
                pl.BlockSpec((d_h, d_a), wmap),       # attn_mlp W1^T
                pl.BlockSpec((1, d_a), wmap),         # attn_mlp b1
                pl.BlockSpec((d_a, d_h), wmap),       # attn_mlp W2^T
                pl.BlockSpec((1, d_h), wmap),         # attn_mlp b2
                pl.BlockSpec((d_h, d_out), wmap),     # layer3 W^T
                pl.BlockSpec((1, d_out), wmap),       # layer3 b
            ],
            out_specs=pl.BlockSpec((1, tq, d_out), qrow),
            scratch_shapes=[
                pltpu.VMEM((tq, d_h), jnp.float32),       # q rows
                pltpu.VMEM((tq, p_hid), jnp.float32),     # pos-proj of query rows
                pltpu.VMEM((tq, d_h), jnp.float32),       # per-query aggregation
            ],
        ),
        compiler_params=pltpu.CompilerParams(
            # No cross-iteration state -> both axes independent (v7x can shard either one).
            dimension_semantics=("parallel", "parallel"),
            vmem_limit_bytes=32 * 1024 * 1024,
        ),
    )(x, x, p, p,
      wb["w1t"], wb["b1"], wb["wqt"], wb["wkt"], wb["wvt"],
      wb["wp1t"], wb["bp1"], wb["wp2t"], wb["bp2"],
      wb["wa1t"], wb["ba1"], wb["wa2t"], wb["ba2"],
      wb["w3t"], wb["b3"])

    return z, p


# ---------------------------------------------------------------------------
# Deterministic parameter init (shapes follow the PyTorch module's __init__)
# ---------------------------------------------------------------------------
def init_params(key, d_in, d_h, d_out):
    ks = iter(jax.random.split(key, 16))
    w = lambda shape: 0.1 * jax.random.normal(next(ks), shape, jnp.float32)
    return dict(
        w1t=w((d_in, d_h)), b1=w((1, d_h)),                              # layer1
        wqt=w((d_h, d_h)), wkt=w((d_h, d_h)), wvt=w((d_h, d_h)),         # to_q/k/v (no bias)
        wp1t=w((3, POS_HIDDEN)), bp1=w((1, POS_HIDDEN)),                 # pos_mlp[0]
        wp2t=w((POS_HIDDEN, d_h)), bp2=w((1, d_h)),                      # pos_mlp[2]
        wa1t=w((d_h, ATTN_MULT * d_h)), ba1=w((1, ATTN_MULT * d_h)),     # attn_mlp[0]
        wa2t=w((ATTN_MULT * d_h, d_h)), ba2=w((1, d_h)),                 # attn_mlp[2]
        w3t=w((d_h, d_out)), b3=w((1, d_out)),                           # layer3
    )


# Pure-JAX f32 reference (mirrors the PyTorch forward with x2=None, num_neighbors >= N)
def reference(x, p, params):
    y = x @ params["w1t"] + params["b1"][0]
    q = y @ params["wqt"]; k = y @ params["wkt"]; v = y @ params["wvt"]
    rel_pos = p[:, :, None, :] - p[:, None, :, :]
    rpe = (jnp.maximum(rel_pos @ params["wp1t"] + params["bp1"][0], 0.0)
           @ params["wp2t"] + params["bp2"][0])
    qk_rel = q[:, :, None, :] - k[:, None, :, :]
    v_exp = v[:, None, :, :] + rpe
    sim = (jnp.maximum((qk_rel + rpe) @ params["wa1t"] + params["ba1"][0], 0.0)
           @ params["wa2t"] + params["ba2"][0])
    attn = jax.nn.softmax(sim, axis=-2)
    agg = (attn * v_exp).sum(axis=-2)
    out = agg @ params["w3t"] + params["b3"][0]
    return x + out, p


if __name__ == "__main__":
    B, N = 2, 16
    d_in = d_hidden = d_out = 32
    num_neighbors = 16   # == N -> dense (no-KNN) path, same as the PyTorch layer in this regime

    key = jax.random.PRNGKey(0)
    kx, kp, kw = jax.random.split(key, 3)
    x = jax.random.normal(kx, (B, N, d_in), jnp.float32)
    p = jax.random.normal(kp, (B, N, 3), jnp.float32)
    params = init_params(kw, d_in, d_hidden, d_out)

    z, p_out = point_transformer_block(x, p, params, num_neighbors=num_neighbors, q_tile=8)
    z = jax.block_until_ready(z)

    z_ref, _ = reference(x, p, params)
    err = float(jnp.max(jnp.abs(z - z_ref)))
    # Tolerance accounts for bf16 MXU operands (f32 accumulation) and the approx-reciprocal
    # softmax normalization; observed error is ~1e-3 against the pure-f32 reference.
    assert jnp.allclose(z, z_ref, atol=1e-2, rtol=1e-2), f"max abs err {err}"
    print("KERNEL_OK")
</pallas_src>

<mosaic_0001>
module attributes {stable_mosaic.version = 11 : i64} {
  func.func @_ptb_kernel(%arg0: i32, %arg1: i32, %arg2: memref<1x16x32xf32, #tpu.memory_space<vmem>>, %arg3: memref<1x8x32xf32, #tpu.memory_space<vmem>>, %arg4: memref<1x16x3xf32, #tpu.memory_space<vmem>>, %arg5: memref<1x8x3xf32, #tpu.memory_space<vmem>>, %arg6: memref<32x32xbf16, #tpu.memory_space<vmem>>, %arg7: memref<1x32xf32, #tpu.memory_space<vmem>>, %arg8: memref<32x32xbf16, #tpu.memory_space<vmem>>, %arg9: memref<32x32xbf16, #tpu.memory_space<vmem>>, %arg10: memref<32x32xbf16, #tpu.memory_space<vmem>>, %arg11: memref<3x32xbf16, #tpu.memory_space<vmem>>, %arg12: memref<1x32xf32, #tpu.memory_space<vmem>>, %arg13: memref<32x32xbf16, #tpu.memory_space<vmem>>, %arg14: memref<1x32xf32, #tpu.memory_space<vmem>>, %arg15: memref<32x64xbf16, #tpu.memory_space<vmem>>, %arg16: memref<1x64xf32, #tpu.memory_space<vmem>>, %arg17: memref<64x32xbf16, #tpu.memory_space<vmem>>, %arg18: memref<1x32xf32, #tpu.memory_space<vmem>>, %arg19: memref<32x32xbf16, #tpu.memory_space<vmem>>, %arg20: memref<1x32xf32, #tpu.memory_space<vmem>>, %arg21: memref<1x8x32xf32, #tpu.memory_space<vmem>>, %arg22: memref<8x32xf32, #tpu.memory_space<vmem>>, %arg23: memref<8x32xf32, #tpu.memory_space<vmem>>, %arg24: memref<8x32xf32, #tpu.memory_space<vmem>>) attributes {dimension_semantics = [#tpu.dimension_semantics<parallel>, #tpu.dimension_semantics<parallel>], iteration_bounds = array<i64: 2, 2>, scalar_prefetch = 0 : i64, scratch_operands = 3 : i64, tpu.core_type = #tpu.core_type<tc>, window_params = [{transform_indices = @transform_0, window_bounds = array<i64: 1, 16, 32>}, {transform_indices = @transform_1, window_bounds = array<i64: 1, 8, 32>}, {transform_indices = @transform_2, window_bounds = array<i64: 1, 16, 3>}, {transform_indices = @transform_3, window_bounds = array<i64: 1, 8, 3>}, {pipeline_mode = #tpu.pipeline_mode<synchronous>, transform_indices = @transform_4, window_bounds = array<i64: 32, 32>}, {pipeline_mode = #tpu.pipeline_mode<synchronous>, transform_indices = @transform_5, window_bounds = array<i64: 1, 32>}, {pipeline_mode = #tpu.pipeline_mode<synchronous>, transform_indices = @transform_6, window_bounds = array<i64: 32, 32>}, {pipeline_mode = #tpu.pipeline_mode<synchronous>, transform_indices = @transform_7, window_bounds = array<i64: 32, 32>}, {pipeline_mode = #tpu.pipeline_mode<synchronous>, transform_indices = @transform_8, window_bounds = array<i64: 32, 32>}, {pipeline_mode = #tpu.pipeline_mode<synchronous>, transform_indices = @transform_9, window_bounds = array<i64: 3, 32>}, {pipeline_mode = #tpu.pipeline_mode<synchronous>, transform_indices = @transform_10, window_bounds = array<i64: 1, 32>}, {pipeline_mode = #tpu.pipeline_mode<synchronous>, transform_indices = @transform_11, window_bounds = array<i64: 32, 32>}, {pipeline_mode = #tpu.pipeline_mode<synchronous>, transform_indices = @transform_12, window_bounds = array<i64: 1, 32>}, {pipeline_mode = #tpu.pipeline_mode<synchronous>, transform_indices = @transform_13, window_bounds = array<i64: 32, 64>}, {pipeline_mode = #tpu.pipeline_mode<synchronous>, transform_indices = @transform_14, window_bounds = array<i64: 1, 64>}, {pipeline_mode = #tpu.pipeline_mode<synchronous>, transform_indices = @transform_15, window_bounds = array<i64: 64, 32>}, {pipeline_mode = #tpu.pipeline_mode<synchronous>, transform_indices = @transform_16, window_bounds = array<i64: 1, 32>}, {pipeline_mode = #tpu.pipeline_mode<synchronous>, transform_indices = @transform_17, window_bounds = array<i64: 32, 32>}, {pipeline_mode = #tpu.pipeline_mode<synchronous>, transform_indices = @transform_18, window_bounds = array<i64: 1, 32>}, {transform_indices = @transform_19, window_bounds = array<i64: 1, 8, 32>}]} {
    %c0 = arith.constant 0 : index
    %c0_0 = arith.constant 0 : index
    %c0_1 = arith.constant 0 : index
    %0 = vector.load %arg2[%c0, %c0_0, %c0_1] : memref<1x16x32xf32, #tpu.memory_space<vmem>>, vector<1x16x32xf32>
    %1 = vector.shape_cast %0 : vector<1x16x32xf32> to vector<16x32xf32>
    %c0_2 = arith.constant 0 : index
    %c0_3 = arith.constant 0 : index
    %c0_4 = arith.constant 0 : index
    %2 = vector.load %arg3[%c0_2, %c0_3, %c0_4] : memref<1x8x32xf32, #tpu.memory_space<vmem>>, vector<1x8x32xf32>
    %3 = vector.shape_cast %2 : vector<1x8x32xf32> to vector<8x32xf32>
    %c0_5 = arith.constant 0 : index
    %c0_6 = arith.constant 0 : index
    %c0_7 = arith.constant 0 : index
    %4 = vector.load %arg4[%c0_5, %c0_6, %c0_7] : memref<1x16x3xf32, #tpu.memory_space<vmem>>, vector<1x16x3xf32>
    %5 = vector.shape_cast %4 : vector<1x16x3xf32> to vector<16x3xf32>
    %c0_8 = arith.constant 0 : index
    %c0_9 = arith.constant 0 : index
    %c0_10 = arith.constant 0 : index
    %6 = vector.load %arg5[%c0_8, %c0_9, %c0_10] : memref<1x8x3xf32, #tpu.memory_space<vmem>>, vector<1x8x3xf32>
    %7 = vector.shape_cast %6 : vector<1x8x3xf32> to vector<8x3xf32>
    %8 = arith.truncf %1 : vector<16x32xf32> to vector<16x32xbf16>
    %c0_11 = arith.constant 0 : index
    %c0_12 = arith.constant 0 : index
    %9 = vector.load %arg6[%c0_11, %c0_12] : memref<32x32xbf16, #tpu.memory_space<vmem>>, vector<32x32xbf16>
    %cst = arith.constant dense<0.000000e+00> : vector<16x32xf32>
    %10 = tpu.matmul %8, %9, %cst {dimension_numbers = #tpu.dot_dimension_numbers<[1], [0], [0], [1], [0, 0, 1, 1], [], []>} : vector<16x32xbf16>, vector<32x32xbf16>, vector<16x32xf32> -> vector<16x32xf32>
    %c0_13 = arith.constant 0 : index
    %c0_14 = arith.constant 0 : index
    %11 = vector.load %arg7[%c0_13, %c0_14] : memref<1x32xf32, #tpu.memory_space<vmem>>, vector<1x32xf32>
    %12 = vector.broadcast %11 : vector<1x32xf32> to vector<16x32xf32>
    %13 = arith.addf %10, %12 : vector<16x32xf32>
    %14 = arith.truncf %3 : vector<8x32xf32> to vector<8x32xbf16>
    %c0_15 = arith.constant 0 : index
    %c0_16 = arith.constant 0 : index
    %15 = vector.load %arg6[%c0_15, %c0_16] : memref<32x32xbf16, #tpu.memory_space<vmem>>, vector<32x32xbf16>
    %cst_17 = arith.constant dense<0.000000e+00> : vector<8x32xf32>
    %16 = tpu.matmul %14, %15, %cst_17 {dimension_numbers = #tpu.dot_dimension_numbers<[1], [0], [0], [1], [0, 0, 1, 1], [], []>} : vector<8x32xbf16>, vector<32x32xbf16>, vector<8x32xf32> -> vector<8x32xf32>
    %c0_18 = arith.constant 0 : index
    %c0_19 = arith.constant 0 : index
    %17 = vector.load %arg7[%c0_18, %c0_19] : memref<1x32xf32, #tpu.memory_space<vmem>>, vector<1x32xf32>
    %18 = vector.broadcast %17 : vector<1x32xf32> to vector<8x32xf32>
    %19 = arith.addf %16, %18 : vector<8x32xf32>
    %20 = arith.truncf %13 : vector<16x32xf32> to vector<16x32xbf16>
    %c0_20 = arith.constant 0 : index
    %c0_21 = arith.constant 0 : index
    %21 = vector.load %arg9[%c0_20, %c0_21] : memref<32x32xbf16, #tpu.memory_space<vmem>>, vector<32x32xbf16>
    %cst_22 = arith.constant dense<0.000000e+00> : vector<16x32xf32>
    %22 = tpu.matmul %20, %21, %cst_22 {dimension_numbers = #tpu.dot_dimension_numbers<[1], [0], [0], [1], [0, 0, 1, 1], [], []>} : vector<16x32xbf16>, vector<32x32xbf16>, vector<16x32xf32> -> vector<16x32xf32>
    %23 = arith.truncf %13 : vector<16x32xf32> to vector<16x32xbf16>
    %c0_23 = arith.constant 0 : index
    %c0_24 = arith.constant 0 : index
    %24 = vector.load %arg10[%c0_23, %c0_24] : memref<32x32xbf16, #tpu.memory_space<vmem>>, vector<32x32xbf16>
    %cst_25 = arith.constant dense<0.000000e+00> : vector<16x32xf32>
    %25 = tpu.matmul %23, %24, %cst_25 {dimension_numbers = #tpu.dot_dimension_numbers<[1], [0], [0], [1], [0, 0, 1, 1], [], []>} : vector<16x32xbf16>, vector<32x32xbf16>, vector<16x32xf32> -> vector<16x32xf32>
    %26 = arith.truncf %19 : vector<8x32xf32> to vector<8x32xbf16>
    %c0_26 = arith.constant 0 : index
    %c0_27 = arith.constant 0 : index
    %27 = vector.load %arg8[%c0_26, %c0_27] : memref<32x32xbf16, #tpu.memory_space<vmem>>, vector<32x32xbf16>
    %cst_28 = arith.constant dense<0.000000e+00> : vector<8x32xf32>
    %28 = tpu.matmul %26, %27, %cst_28 {dimension_numbers = #tpu.dot_dimension_numbers<[1], [0], [0], [1], [0, 0, 1, 1], [], []>} : vector<8x32xbf16>, vector<32x32xbf16>, vector<8x32xf32> -> vector<8x32xf32>
    %c0_29 = arith.constant 0 : index
    %c0_30 = arith.constant 0 : index
    %29 = vector.load %arg22[%c0_29, %c0_30] : memref<8x32xf32, #tpu.memory_space<vmem>>, vector<8x32xf32>
    tpu.vector_store %arg22[%c0_29, %c0_30], %28 {strides = array<i32>} : memref<8x32xf32, #tpu.memory_space<vmem>>, vector<8x32xf32>,
    %30 = arith.truncf %7 : vector<8x3xf32> to vector<8x3xbf16>
    %c0_31 = arith.constant 0 : index
    %c0_32 = arith.constant 0 : index
    %31 = vector.load %arg11[%c0_31, %c0_32] : memref<3x32xbf16, #tpu.memory_space<vmem>>, vector<3x32xbf16>
    %cst_33 = arith.constant dense<0.000000e+00> : vector<8x32xf32>
    %32 = tpu.matmul %30, %31, %cst_33 {dimension_numbers = #tpu.dot_dimension_numbers<[1], [0], [0], [1], [0, 0, 1, 1], [], []>} : vector<8x3xbf16>, vector<3x32xbf16>, vector<8x32xf32> -> vector<8x32xf32>
    %c0_34 = arith.constant 0 : index
    %c0_35 = arith.constant 0 : index
    %33 = vector.load %arg23[%c0_34, %c0_35] : memref<8x32xf32, #tpu.memory_space<vmem>>, vector<8x32xf32>
    tpu.vector_store %arg23[%c0_34, %c0_35], %32 {strides = array<i32>} : memref<8x32xf32, #tpu.memory_space<vmem>>, vector<8x32xf32>,
    %34 = arith.truncf %5 : vector<16x3xf32> to vector<16x3xbf16>
    %c0_36 = arith.constant 0 : index
    %c0_37 = arith.constant 0 : index
    %35 = vector.load %arg11[%c0_36, %c0_37] : memref<3x32xbf16, #tpu.memory_space<vmem>>, vector<3x32xbf16>
    %cst_38 = arith.constant dense<0.000000e+00> : vector<16x32xf32>
    %36 = tpu.matmul %34, %35, %cst_38 {dimension_numbers = #tpu.dot_dimension_numbers<[1], [0], [0], [1], [0, 0, 1, 1], [], []>} : vector<16x3xbf16>, vector<3x32xbf16>, vector<16x32xf32> -> vector<16x32xf32>
    %c0_39 = arith.constant 0 : index
    %c0_40 = arith.constant 0 : index
    %37 = vector.load %arg12[%c0_39, %c0_40] : memref<1x32xf32, #tpu.memory_space<vmem>>, vector<1x32xf32>
    %c0_41 = arith.constant 0 : index
    %c0_42 = arith.constant 0 : index
    %38 = vector.load %arg23[%c0_41, %c0_42] : memref<8x32xf32, #tpu.memory_space<vmem>>, vector<1x32xf32>
    %c0_43 = arith.constant 0 : index
    %c0_44 = arith.constant 0 : index
    %39 = vector.load %arg22[%c0_43, %c0_44] : memref<8x32xf32, #tpu.memory_space<vmem>>, vector<1x32xf32>
    %40 = vector.broadcast %38 : vector<1x32xf32> to vector<16x32xf32>
    %41 = arith.subf %40, %36 : vector<16x32xf32>
    %42 = vector.broadcast %37 : vector<1x32xf32> to vector<16x32xf32>
    %43 = arith.addf %41, %42 : vector<16x32xf32>
    %cst_45 = arith.constant 0.000000e+00 : f32
    %44 = vector.broadcast %cst_45 : f32 to vector<16x32xf32>
    %45 = arith.maximumf %43, %44 : vector<16x32xf32>
    %46 = vector.broadcast %39 : vector<1x32xf32> to vector<16x32xf32>
    %47 = arith.subf %46, %22 : vector<16x32xf32>
    %c1 = arith.constant 1 : index
    %c0_46 = arith.constant 0 : index
    %48 = vector.load %arg23[%c1, %c0_46] : memref<8x32xf32, #tpu.memory_space<vmem>>, vector<1x32xf32>
    %c1_47 = arith.constant 1 : index
    %c0_48 = arith.constant 0 : index
    %49 = vector.load %arg22[%c1_47, %c0_48] : memref<8x32xf32, #tpu.memory_space<vmem>>, vector<1x32xf32>
    %50 = vector.broadcast %48 : vector<1x32xf32> to vector<16x32xf32>
    %51 = arith.subf %50, %36 : vector<16x32xf32>
    %52 = vector.broadcast %37 : vector<1x32xf32> to vector<16x32xf32>
    %53 = arith.addf %51, %52 : vector<16x32xf32>
    %cst_49 = arith.constant 0.000000e+00 : f32
    %54 = vector.broadcast %cst_49 : f32 to vector<16x32xf32>
    %55 = arith.maximumf %53, %54 : vector<16x32xf32>
    %56 = vector.broadcast %49 : vector<1x32xf32> to vector<16x32xf32>
    %57 = arith.subf %56, %22 : vector<16x32xf32>
    %c2 = arith.constant 2 : index
    %c0_50 = arith.constant 0 : index
    %58 = vector.load %arg23[%c2, %c0_50] : memref<8x32xf32, #tpu.memory_space<vmem>>, vector<1x32xf32>
    %c2_51 = arith.constant 2 : index
    %c0_52 = arith.constant 0 : index
    %59 = vector.load %arg22[%c2_51, %c0_52] : memref<8x32xf32, #tpu.memory_space<vmem>>, vector<1x32xf32>
    %60 = vector.broadcast %58 : vector<1x32xf32> to vector<16x32xf32>
    %61 = arith.subf %60, %36 : vector<16x32xf32>
    %62 = vector.broadcast %37 : vector<1x32xf32> to vector<16x32xf32>
    %63 = arith.addf %61, %62 : vector<16x32xf32>
    %cst_53 = arith.constant 0.000000e+00 : f32
    %64 = vector.broadcast %cst_53 : f32 to vector<16x32xf32>
    %65 = arith.maximumf %63, %64 : vector<16x32xf32>
    %66 = vector.broadcast %59 : vector<1x32xf32> to vector<16x32xf32>
    %67 = arith.subf %66, %22 : vector<16x32xf32>
    %c3 = arith.constant 3 : index
    %c0_54 = arith.constant 0 : index
    %68 = vector.load %arg23[%c3, %c0_54] : memref<8x32xf32, #tpu.memory_space<vmem>>, vector<1x32xf32>
    %c3_55 = arith.constant 3 : index
    %c0_56 = arith.constant 0 : index
    %69 = vector.load %arg22[%c3_55, %c0_56] : memref<8x32xf32, #tpu.memory_space<vmem>>, vector<1x32xf32>
    %70 = vector.broadcast %68 : vector<1x32xf32> to vector<16x32xf32>
    %71 = arith.subf %70, %36 : vector<16x32xf32>
    %72 = vector.broadcast %37 : vector<1x32xf32> to vector<16x32xf32>
    %73 = arith.addf %71, %72 : vector<16x32xf32>
    %cst_57 = arith.constant 0.000000e+00 : f32
    %74 = vector.broadcast %cst_57 : f32 to vector<16x32xf32>
    %75 = arith.maximumf %73, %74 : vector<16x32xf32>
    %76 = vector.broadcast %69 : vector<1x32xf32> to vector<16x32xf32>
    %77 = arith.subf %76, %22 : vector<16x32xf32>
    %c4 = arith.constant 4 : index
    %c0_58 = arith.constant 0 : index
    %78 = vector.load %arg23[%c4, %c0_58] : memref<8x32xf32, #tpu.memory_space<vmem>>, vector<1x32xf32>
    %c4_59 = arith.constant 4 : index
    %c0_60 = arith.constant 0 : index
    %79 = vector.load %arg22[%c4_59, %c0_60] : memref<8x32xf32, #tpu.memory_space<vmem>>, vector<1x32xf32>
    %80 = vector.broadcast %78 : vector<1x32xf32> to vector<16x32xf32>
    %81 = arith.subf %80, %36 : vector<16x32xf32>
    %82 = vector.broadcast %37 : vector<1x32xf32> to vector<16x32xf32>
    %83 = arith.addf %81, %82 : vector<16x32xf32>
    %cst_61 = arith.constant 0.000000e+00 : f32
    %84 = vector.broadcast %cst_61 : f32 to vector<16x32xf32>
    %85 = arith.maximumf %83, %84 : vector<16x32xf32>
    %86 = vector.broadcast %79 : vector<1x32xf32> to vector<16x32xf32>
    %87 = arith.subf %86, %22 : vector<16x32xf32>
    %c5 = arith.constant 5 : index
    %c0_62 = arith.constant 0 : index
    %88 = vector.load %arg23[%c5, %c0_62] : memref<8x32xf32, #tpu.memory_space<vmem>>, vector<1x32xf32>
    %c5_63 = arith.constant 5 : index
    %c0_64 = arith.constant 0 : index
    %89 = vector.load %arg22[%c5_63, %c0_64] : memref<8x32xf32, #tpu.memory_space<vmem>>, vector<1x32xf32>
    %90 = vector.broadcast %88 : vector<1x32xf32> to vector<16x32xf32>
    %91 = arith.subf %90, %36 : vector<16x32xf32>
    %92 = vector.broadcast %37 : vector<1x32xf32> to vector<16x32xf32>
    %93 = arith.addf %91, %92 : vector<16x32xf32>
    %cst_65 = arith.constant 0.000000e+00 : f32
    %94 = vector.broadcast %cst_65 : f32 to vector<16x32xf32>
    %95 = arith.maximumf %93, %94 : vector<16x32xf32>
    %96 = vector.broadcast %89 : vector<1x32xf32> to vector<16x32xf32>
    %97 = arith.subf %96, %22 : vector<16x32xf32>
    %c6 = arith.constant 6 : index
    %c0_66 = arith.constant 0 : index
    %98 = vector.load %arg23[%c6, %c0_66] : memref<8x32xf32, #tpu.memory_space<vmem>>, vector<1x32xf32>
    %c6_67 = arith.constant 6 : index
    %c0_68 = arith.constant 0 : index
    %99 = vector.load %arg22[%c6_67, %c0_68] : memref<8x32xf32, #tpu.memory_space<vmem>>, vector<1x32xf32>
    %100 = vector.broadcast %98 : vector<1x32xf32> to vector<16x32xf32>
    %101 = arith.subf %100, %36 : vector<16x32xf32>
    %102 = vector.broadcast %37 : vector<1x32xf32> to vector<16x32xf32>
    %103 = arith.addf %101, %102 : vector<16x32xf32>
    %cst_69 = arith.constant 0.000000e+00 : f32
    %104 = vector.broadcast %cst_69 : f32 to vector<16x32xf32>
    %105 = arith.maximumf %103, %104 : vector<16x32xf32>
    %106 = vector.broadcast %99 : vector<1x32xf32> to vector<16x32xf32>
    %107 = arith.subf %106, %22 : vector<16x32xf32>
    %c7 = arith.constant 7 : index
    %c0_70 = arith.constant 0 : index
    %108 = vector.load %arg23[%c7, %c0_70] : memref<8x32xf32, #tpu.memory_space<vmem>>, vector<1x32xf32>
    %c7_71 = arith.constant 7 : index
    %c0_72 = arith.constant 0 : index
    %109 = vector.load %arg22[%c7_71, %c0_72] : memref<8x32xf32, #tpu.memory_space<vmem>>, vector<1x32xf32>
    %110 = vector.broadcast %108 : vector<1x32xf32> to vector<16x32xf32>
    %111 = arith.subf %110, %36 : vector<16x32xf32>
    %112 = vector.broadcast %37 : vector<1x32xf32> to vector<16x32xf32>
    %113 = arith.addf %111, %112 : vector<16x32xf32>
    %cst_73 = arith.constant 0.000000e+00 : f32
    %114 = vector.broadcast %cst_73 : f32 to vector<16x32xf32>
    %115 = arith.maximumf %113, %114 : vector<16x32xf32>
    %116 = vector.broadcast %109 : vector<1x32xf32> to vector<16x32xf32>
    %117 = arith.subf %116, %22 : vector<16x32xf32>
    %118 = tpu.concatenate %45, %55, %65, %75, %85, %95, %105, %115 in 0 : vector<16x32xf32>, vector<16x32xf32>, vector<16x32xf32>, vector<16x32xf32>, vector<16x32xf32>, vector<16x32xf32>, vector<16x32xf32>, vector<16x32xf32> -> vector<128x32xf32>
    %119 = tpu.concatenate %47, %57, %67, %77, %87, %97, %107, %117 in 0 : vector<16x32xf32>, vector<16x32xf32>, vector<16x32xf32>, vector<16x32xf32>, vector<16x32xf32>, vector<16x32xf32>, vector<16x32xf32>, vector<16x32xf32> -> vector<128x32xf32>
    %120 = tpu.concatenate %25, %25, %25, %25, %25, %25, %25, %25 in 0 : vector<16x32xf32>, vector<16x32xf32>, vector<16x32xf32>, vector<16x32xf32>, vector<16x32xf32>, vector<16x32xf32>, vector<16x32xf32>, vector<16x32xf32> -> vector<128x32xf32>
    %121 = arith.truncf %118 : vector<128x32xf32> to vector<128x32xbf16>
    %c0_74 = arith.constant 0 : index
    %c0_75 = arith.constant 0 : index
    %122 = vector.load %arg13[%c0_74, %c0_75] : memref<32x32xbf16, #tpu.memory_space<vmem>>, vector<32x32xbf16>
    %cst_76 = arith.constant dense<0.000000e+00> : vector<128x32xf32>
    %123 = tpu.matmul %121, %122, %cst_76 {dimension_numbers = #tpu.dot_dimension_numbers<[1], [0], [0], [1], [0, 0, 1, 1], [], []>} : vector<128x32xbf16>, vector<32x32xbf16>, vector<128x32xf32> -> vector<128x32xf32>
    %c0_77 = arith.constant 0 : index
    %c0_78 = arith.constant 0 : index
    %124 = vector.load %arg14[%c0_77, %c0_78] : memref<1x32xf32, #tpu.memory_space<vmem>>, vector<1x32xf32>
    %125 = vector.broadcast %124 : vector<1x32xf32> to vector<128x32xf32>
    %126 = arith.addf %123, %125 : vector<128x32xf32>
    %127 = arith.addf %120, %126 : vector<128x32xf32>
    %128 = arith.addf %119, %126 : vector<128x32xf32>
    %129 = arith.truncf %128 : vector<128x32xf32> to vector<128x32xbf16>
    %c0_79 = arith.constant 0 : index
    %c0_80 = arith.constant 0 : index
    %130 = vector.load %arg15[%c0_79, %c0_80] : memref<32x64xbf16, #tpu.memory_space<vmem>>, vector<32x64xbf16>
    %cst_81 = arith.constant dense<0.000000e+00> : vector<128x64xf32>
    %131 = tpu.matmul %129, %130, %cst_81 {dimension_numbers = #tpu.dot_dimension_numbers<[1], [0], [0], [1], [0, 0, 1, 1], [], []>} : vector<128x32xbf16>, vector<32x64xbf16>, vector<128x64xf32> -> vector<128x64xf32>
    %c0_82 = arith.constant 0 : index
    %c0_83 = arith.constant 0 : index
    %132 = vector.load %arg16[%c0_82, %c0_83] : memref<1x64xf32, #tpu.memory_space<vmem>>, vector<1x64xf32>
    %133 = vector.broadcast %132 : vector<1x64xf32> to vector<128x64xf32>
    %134 = arith.addf %131, %133 : vector<128x64xf32>
    %cst_84 = arith.constant 0.000000e+00 : f32
    %135 = vector.broadcast %cst_84 : f32 to vector<128x64xf32>
    %136 = arith.maximumf %134, %135 : vector<128x64xf32>
    %137 = arith.truncf %136 : vector<128x64xf32> to vector<128x64xbf16>
    %c0_85 = arith.constant 0 : index
    %c0_86 = arith.constant 0 : index
    %138 = vector.load %arg17[%c0_85, %c0_86] : memref<64x32xbf16, #tpu.memory_space<vmem>>, vector<64x32xbf16>
    %cst_87 = arith.constant dense<0.000000e+00> : vector<128x32xf32>
    %139 = tpu.matmul %137, %138, %cst_87 {dimension_numbers = #tpu.dot_dimension_numbers<[1], [0], [0], [1], [0, 0, 1, 1], [], []>} : vector<128x64xbf16>, vector<64x32xbf16>, vector<128x32xf32> -> vector<128x32xf32>
    %c0_88 = arith.constant 0 : index
    %c0_89 = arith.constant 0 : index
    %140 = vector.load %arg18[%c0_88, %c0_89] : memref<1x32xf32, #tpu.memory_space<vmem>>, vector<1x32xf32>
    %141 = vector.broadcast %140 : vector<1x32xf32> to vector<128x32xf32>
    %142 = arith.addf %139, %141 : vector<128x32xf32>
    %143 = vector.extract_strided_slice %142 {offsets = [0, 0], sizes = [16, 32], strides = [1, 1]} : vector<128x32xf32> to vector<16x32xf32>
    %144 = vector.extract_strided_slice %127 {offsets = [0, 0], sizes = [16, 32], strides = [1, 1]} : vector<128x32xf32> to vector<16x32xf32>
    %cst_90 = arith.constant dense<0xFF800000> : vector<32xf32>
    %145 = vector.multi_reduction <maximumf>, %143, %cst_90 [0] : vector<16x32xf32> to vector<32xf32>
    %146 = vector.shape_cast %145 : vector<32xf32> to vector<1x32xf32>
    %147 = vector.broadcast %146 : vector<1x32xf32> to vector<16x32xf32>
    %148 = arith.subf %143, %147 : vector<16x32xf32>
    %149 = math.exp %148 : vector<16x32xf32>
    %cst_91 = arith.constant dense<0.000000e+00> : vector<32xf32>
    %150 = vector.multi_reduction <add>, %149, %cst_91 [0] : vector<16x32xf32> to vector<32xf32>
    %151 = vector.shape_cast %150 : vector<32xf32> to vector<1x32xf32>
    %152 = tpu.reciprocal %151 {approx = true} : vector<1x32xf32> -> vector<1x32xf32>
    %153 = vector.broadcast %152 : vector<1x32xf32> to vector<16x32xf32>
    %154 = arith.mulf %149, %153 : vector<16x32xf32>
    %155 = arith.mulf %154, %144 : vector<16x32xf32>
    %cst_92 = arith.constant dense<0.000000e+00> : vector<32xf32>
    %156 = vector.multi_reduction <add>, %155, %cst_92 [0] : vector<16x32xf32> to vector<32xf32>
    %157 = vector.shape_cast %156 : vector<32xf32> to vector<1x32xf32>
    %c0_93 = arith.constant 0 : index
    %c0_94 = arith.constant 0 : index
    %158 = vector.load %arg24[%c0_93, %c0_94] : memref<8x32xf32, #tpu.memory_space<vmem>>, vector<1x32xf32>
    tpu.vector_store %arg24[%c0_93, %c0_94], %157 {strides = array<i32>} : memref<8x32xf32, #tpu.memory_space<vmem>>, vector<1x32xf32>,
    %159 = vector.extract_strided_slice %142 {offsets = [16, 0], sizes = [16, 32], strides = [1, 1]} : vector<128x32xf32> to vector<16x32xf32>
    %160 = vector.extract_strided_slice %127 {offsets = [16, 0], sizes = [16, 32], strides = [1, 1]} : vector<128x32xf32> to vector<16x32xf32>
    %cst_95 = arith.constant dense<0xFF800000> : vector<32xf32>
    %161 = vector.multi_reduction <maximumf>, %159, %cst_95 [0] : vector<16x32xf32> to vector<32xf32>
    %162 = vector.shape_cast %161 : vector<32xf32> to vector<1x32xf32>
    %163 = vector.broadcast %162 : vector<1x32xf32> to vector<16x32xf32>
    %164 = arith.subf %159, %163 : vector<16x32xf32>
    %165 = math.exp %164 : vector<16x32xf32>
    %cst_96 = arith.constant dense<0.000000e+00> : vector<32xf32>
    %166 = vector.multi_reduction <add>, %165, %cst_96 [0] : vector<16x32xf32> to vector<32xf32>
    %167 = vector.shape_cast %166 : vector<32xf32> to vector<1x32xf32>
    %168 = tpu.reciprocal %167 {approx = true} : vector<1x32xf32> -> vector<1x32xf32>
    %169 = vector.broadcast %168 : vector<1x32xf32> to vector<16x32xf32>
    %170 = arith.mulf %165, %169 : vector<16x32xf32>
    %171 = arith.mulf %170, %160 : vector<16x32xf32>
    %cst_97 = arith.constant dense<0.000000e+00> : vector<32xf32>
    %172 = vector.multi_reduction <add>, %171, %cst_97 [0] : vector<16x32xf32> to vector<32xf32>
    %173 = vector.shape_cast %172 : vector<32xf32> to vector<1x32xf32>
    %c1_98 = arith.constant 1 : index
    %c0_99 = arith.constant 0 : index
    %174 = vector.load %arg24[%c1_98, %c0_99] : memref<8x32xf32, #tpu.memory_space<vmem>>, vector<1x32xf32>
    tpu.vector_store %arg24[%c1_98, %c0_99], %173 {strides = array<i32>} : memref<8x32xf32, #tpu.memory_space<vmem>>, vector<1x32xf32>,
    %175 = vector.extract_strided_slice %142 {offsets = [32, 0], sizes = [16, 32], strides = [1, 1]} : vector<128x32xf32> to vector<16x32xf32>
    %176 = vector.extract_strided_slice %127 {offsets = [32, 0], sizes = [16, 32], strides = [1, 1]} : vector<128x32xf32> to vector<16x32xf32>
    %cst_100 = arith.constant dense<0xFF800000> : vector<32xf32>
    %177 = vector.multi_reduction <maximumf>, %175, %cst_100 [0] : vector<16x32xf32> to vector<32xf32>
    %178 = vector.shape_cast %177 : vector<32xf32> to vector<1x32xf32>
    %179 = vector.broadcast %178 : vector<1x32xf32> to vector<16x32xf32>
    %180 = arith.subf %175, %179 : vector<16x32xf32>
    %181 = math.exp %180 : vector<16x32xf32>
    %cst_101 = arith.constant dense<0.000000e+00> : vector<32xf32>
    %182 = vector.multi_reduction <add>, %181, %cst_101 [0] : vector<16x32xf32> to vector<32xf32>
    %183 = vector.shape_cast %182 : vector<32xf32> to vector<1x32xf32>
    %184 = tpu.reciprocal %183 {approx = true} : vector<1x32xf32> -> vector<1x32xf32>
    %185 = vector.broadcast %184 : vector<1x32xf32> to vector<16x32xf32>
    %186 = arith.mulf %181, %185 : vector<16x32xf32>
    %187 = arith.mulf %186, %176 : vector<16x32xf32>
    %cst_102 = arith.constant dense<0.000000e+00> : vector<32xf32>
    %188 = vector.multi_reduction <add>, %187, %cst_102 [0] : vector<16x32xf32> to vector<32xf32>
    %189 = vector.shape_cast %188 : vector<32xf32> to vector<1x32xf32>
    %c2_103 = arith.constant 2 : index
    %c0_104 = arith.constant 0 : index
    %190 = vector.load %arg24[%c2_103, %c0_104] : memref<8x32xf32, #tpu.memory_space<vmem>>, vector<1x32xf32>
    tpu.vector_store %arg24[%c2_103, %c0_104], %189 {strides = array<i32>} : memref<8x32xf32, #tpu.memory_space<vmem>>, vector<1x32xf32>,
    %191 = vector.extract_strided_slice %142 {offsets = [48, 0], sizes = [16, 32], strides = [1, 1]} : vector<128x32xf32> to vector<16x32xf32>
    %192 = vector.extract_strided_slice %127 {offsets = [48, 0], sizes = [16, 32], strides = [1, 1]} : vector<128x32xf32> to vector<16x32xf32>
    %cst_105 = arith.constant dense<0xFF800000> : vector<32xf32>
    %193 = vector.multi_reduction <maximumf>, %191, %cst_105 [0] : vector<16x32xf32> to vector<32xf32>
    %194 = vector.shape_cast %193 : vector<32xf32> to vector<1x32xf32>
    %195 = vector.broadcast %194 : vector<1x32xf32> to vector<16x32xf32>
    %196 = arith.subf %191, %195 : vector<16x32xf32>
    %197 = math.exp %196 : vector<16x32xf32>
    %cst_106 = arith.constant dense<0.000000e+00> : vector<32xf32>
    %198 = vector.multi_reduction <add>, %197, %cst_106 [0] : vector<16x32xf32> to vector<32xf32>
    %199 = vector.shape_cast %198 : vector<32xf32> to vector<1x32xf32>
    %200 = tpu.reciprocal %199 {approx = true} : vector<1x32xf32> -> vector<1x32xf32>
    %201 = vector.broadcast %200 : vector<1x32xf32> to vector<16x32xf32>
    %202 = arith.mulf %197, %201 : vector<16x32xf32>
    %203 = arith.mulf %202, %192 : vector<16x32xf32>
    %cst_107 = arith.constant dense<0.000000e+00> : vector<32xf32>
    %204 = vector.multi_reduction <add>, %203, %cst_107 [0] : vector<16x32xf32> to vector<32xf32>
    %205 = vector.shape_cast %204 : vector<32xf32> to vector<1x32xf32>
    %c3_108 = arith.constant 3 : index
    %c0_109 = arith.constant 0 : index
    %206 = vector.load %arg24[%c3_108, %c0_109] : memref<8x32xf32, #tpu.memory_space<vmem>>, vector<1x32xf32>
    tpu.vector_store %arg24[%c3_108, %c0_109], %205 {strides = array<i32>} : memref<8x32xf32, #tpu.memory_space<vmem>>, vector<1x32xf32>,
    %207 = vector.extract_strided_slice %142 {offsets = [64, 0], sizes = [16, 32], strides = [1, 1]} : vector<128x32xf32> to vector<16x32xf32>
    %208 = vector.extract_strided_slice %127 {offsets = [64, 0], sizes = [16, 32], strides = [1, 1]} : vector<128x32xf32> to vector<16x32xf32>
    %cst_110 = arith.constant dense<0xFF800000> : vector<32xf32>
    %209 = vector.multi_reduction <maximumf>, %207, %cst_110 [0] : vector<16x32xf32> to vector<32xf32>
    %210 = vector.shape_cast %209 : vector<32xf32> to vector<1x32xf32>
    %211 = vector.broadcast %210 : vector<1x32xf32> to vector<16x32xf32>
    %212 = arith.subf %207, %211 : vector<16x32xf32>
    %213 = math.exp %212 : vector<16x32xf32>
    %cst_111 = arith.constant dense<0.000000e+00> : vector<32xf32>
    %214 = vector.multi_reduction <add>, %213, %cst_111 [0] : vector<16x32xf32> to vector<32xf32>
    %215 = vector.shape_cast %214 : vector<32xf32> to vector<1x32xf32>
    %216 = tpu.reciprocal %215 {approx = true} : vector<1x32xf32> -> vector<1x32xf32>
    %217 = vector.broadcast %216 : vector<1x32xf32> to vector<16x32xf32>
    %218 = arith.mulf %213, %217 : vector<16x32xf32>
    %219 = arith.mulf %218, %208 : vector<16x32xf32>
    %cst_112 = arith.constant dense<0.000000e+00> : vector<32xf32>
    %220 = vector.multi_reduction <add>, %219, %cst_112 [0] : vector<16x32xf32> to vector<32xf32>
    %221 = vector.shape_cast %220 : vector<32xf32> to vector<1x32xf32>
    %c4_113 = arith.constant 4 : index
    %c0_114 = arith.constant 0 : index
    %222 = vector.load %arg24[%c4_113, %c0_114] : memref<8x32xf32, #tpu.memory_space<vmem>>, vector<1x32xf32>
    tpu.vector_store %arg24[%c4_113, %c0_114], %221 {strides = array<i32>} : memref<8x32xf32, #tpu.memory_space<vmem>>, vector<1x32xf32>,
    %223 = vector.extract_strided_slice %142 {offsets = [80, 0], sizes = [16, 32], strides = [1, 1]} : vector<128x32xf32> to vector<16x32xf32>
    %224 = vector.extract_strided_slice %127 {offsets = [80, 0], sizes = [16, 32], strides = [1, 1]} : vector<128x32xf32> to vector<16x32xf32>
    %cst_115 = arith.constant dense<0xFF800000> : vector<32xf32>
    %225 = vector.multi_reduction <maximumf>, %223, %cst_115 [0] : vector<16x32xf32> to vector<32xf32>
    %226 = vector.shape_cast %225 : vector<32xf32> to vector<1x32xf32>
    %227 = vector.broadcast %226 : vector<1x32xf32> to vector<16x32xf32>
    %228 = arith.subf %223, %227 : vector<16x32xf32>
    %229 = math.exp %228 : vector<16x32xf32>
    %cst_116 = arith.constant dense<0.000000e+00> : vector<32xf32>
    %230 = vector.multi_reduction <add>, %229, %cst_116 [0] : vector<16x32xf32> to vector<32xf32>
    %231 = vector.shape_cast %230 : vector<32xf32> to vector<1x32xf32>
    %232 = tpu.reciprocal %231 {approx = true} : vector<1x32xf32> -> vector<1x32xf32>
    %233 = vector.broadcast %232 : vector<1x32xf32> to vector<16x32xf32>
    %234 = arith.mulf %229, %233 : vector<16x32xf32>
    %235 = arith.mulf %234, %224 : vector<16x32xf32>
    %cst_117 = arith.constant dense<0.000000e+00> : vector<32xf32>
    %236 = vector.multi_reduction <add>, %235, %cst_117 [0] : vector<16x32xf32> to vector<32xf32>
    %237 = vector.shape_cast %236 : vector<32xf32> to vector<1x32xf32>
    %c5_118 = arith.constant 5 : index
    %c0_119 = arith.constant 0 : index
    %238 = vector.load %arg24[%c5_118, %c0_119] : memref<8x32xf32, #tpu.memory_space<vmem>>, vector<1x32xf32>
    tpu.vector_store %arg24[%c5_118, %c0_119], %237 {strides = array<i32>} : memref<8x32xf32, #tpu.memory_space<vmem>>, vector<1x32xf32>,
    %239 = vector.extract_strided_slice %142 {offsets = [96, 0], sizes = [16, 32], strides = [1, 1]} : vector<128x32xf32> to vector<16x32xf32>
    %240 = vector.extract_strided_slice %127 {offsets = [96, 0], sizes = [16, 32], strides = [1, 1]} : vector<128x32xf32> to vector<16x32xf32>
    %cst_120 = arith.constant dense<0xFF800000> : vector<32xf32>
    %241 = vector.multi_reduction <maximumf>, %239, %cst_120 [0] : vector<16x32xf32> to vector<32xf32>
    %242 = vector.shape_cast %241 : vector<32xf32> to vector<1x32xf32>
    %243 = vector.broadcast %242 : vector<1x32xf32> to vector<16x32xf32>
    %244 = arith.subf %239, %243 : vector<16x32xf32>
    %245 = math.exp %244 : vector<16x32xf32>
    %cst_121 = arith.constant dense<0.000000e+00> : vector<32xf32>
    %246 = vector.multi_reduction <add>, %245, %cst_121 [0] : vector<16x32xf32> to vector<32xf32>
    %247 = vector.shape_cast %246 : vector<32xf32> to vector<1x32xf32>
    %248 = tpu.reciprocal %247 {approx = true} : vector<1x32xf32> -> vector<1x32xf32>
    %249 = vector.broadcast %248 : vector<1x32xf32> to vector<16x32xf32>
    %250 = arith.mulf %245, %249 : vector<16x32xf32>
    %251 = arith.mulf %250, %240 : vector<16x32xf32>
    %cst_122 = arith.constant dense<0.000000e+00> : vector<32xf32>
    %252 = vector.multi_reduction <add>, %251, %cst_122 [0] : vector<16x32xf32> to vector<32xf32>
    %253 = vector.shape_cast %252 : vector<32xf32> to vector<1x32xf32>
    %c6_123 = arith.constant 6 : index
    %c0_124 = arith.constant 0 : index
    %254 = vector.load %arg24[%c6_123, %c0_124] : memref<8x32xf32, #tpu.memory_space<vmem>>, vector<1x32xf32>
    tpu.vector_store %arg24[%c6_123, %c0_124], %253 {strides = array<i32>} : memref<8x32xf32, #tpu.memory_space<vmem>>, vector<1x32xf32>,
    %255 = vector.extract_strided_slice %142 {offsets = [112, 0], sizes = [16, 32], strides = [1, 1]} : vector<128x32xf32> to vector<16x32xf32>
    %256 = vector.extract_strided_slice %127 {offsets = [112, 0], sizes = [16, 32], strides = [1, 1]} : vector<128x32xf32> to vector<16x32xf32>
    %cst_125 = arith.constant dense<0xFF800000> : vector<32xf32>
    %257 = vector.multi_reduction <maximumf>, %255, %cst_125 [0] : vector<16x32xf32> to vector<32xf32>
    %258 = vector.shape_cast %257 : vector<32xf32> to vector<1x32xf32>
    %259 = vector.broadcast %258 : vector<1x32xf32> to vector<16x32xf32>
    %260 = arith.subf %255, %259 : vector<16x32xf32>
    %261 = math.exp %260 : vector<16x32xf32>
    %cst_126 = arith.constant dense<0.000000e+00> : vector<32xf32>
    %262 = vector.multi_reduction <add>, %261, %cst_126 [0] : vector<16x32xf32> to vector<32xf32>
    %263 = vector.shape_cast %262 : vector<32xf32> to vector<1x32xf32>
    %264 = tpu.reciprocal %263 {approx = true} : vector<1x32xf32> -> vector<1x32xf32>
    %265 = vector.broadcast %264 : vector<1x32xf32> to vector<16x32xf32>
    %266 = arith.mulf %261, %265 : vector<16x32xf32>
    %267 = arith.mulf %266, %256 : vector<16x32xf32>
    %cst_127 = arith.constant dense<0.000000e+00> : vector<32xf32>
    %268 = vector.multi_reduction <add>, %267, %cst_127 [0] : vector<16x32xf32> to vector<32xf32>
    %269 = vector.shape_cast %268 : vector<32xf32> to vector<1x32xf32>
    %c7_128 = arith.constant 7 : index
    %c0_129 = arith.constant 0 : index
    %270 = vector.load %arg24[%c7_128, %c0_129] : memref<8x32xf32, #tpu.memory_space<vmem>>, vector<1x32xf32>
    tpu.vector_store %arg24[%c7_128, %c0_129], %269 {strides = array<i32>} : memref<8x32xf32, #tpu.memory_space<vmem>>, vector<1x32xf32>,
    %c0_130 = arith.constant 0 : index
    %c0_131 = arith.constant 0 : index
    %271 = vector.load %arg24[%c0_130, %c0_131] : memref<8x32xf32, #tpu.memory_space<vmem>>, vector<8x32xf32>
    %272 = arith.truncf %271 : vector<8x32xf32> to vector<8x32xbf16>
    %c0_132 = arith.constant 0 : index
    %c0_133 = arith.constant 0 : index
    %273 = vector.load %arg19[%c0_132, %c0_133] : memref<32x32xbf16, #tpu.memory_space<vmem>>, vector<32x32xbf16>
    %cst_134 = arith.constant dense<0.000000e+00> : vector<8x32xf32>
    %274 = tpu.matmul %272, %273, %cst_134 {dimension_numbers = #tpu.dot_dimension_numbers<[1], [0], [0], [1], [0, 0, 1, 1], [], []>} : vector<8x32xbf16>, vector<32x32xbf16>, vector<8x32xf32> -> vector<8x32xf32>
    %275 = arith.addf %3, %274 : vector<8x32xf32>
    %c0_135 = arith.constant 0 : index
    %c0_136 = arith.constant 0 : index
    %276 = vector.load %arg20[%c0_135, %c0_136] : memref<1x32xf32, #tpu.memory_space<vmem>>, vector<1x32xf32>
    %277 = vector.broadcast %276 : vector<1x32xf32> to vector<8x32xf32>
    %278 = arith.addf %275, %277 : vector<8x32xf32>
    %c0_137 = arith.constant 0 : index
    %c0_138 = arith.constant 0 : index
    %c0_139 = arith.constant 0 : index
    %279 = vector.load %arg21[%c0_137, %c0_138, %c0_139] : memref<1x8x32xf32, #tpu.memory_space<vmem>>, vector<1x8x32xf32>
    %280 = vector.shape_cast %279 : vector<1x8x32xf32> to vector<8x32xf32>
    %281 = vector.shape_cast %278 : vector<8x32xf32> to vector<1x8x32xf32>
    tpu.vector_store %arg21[%c0_137, %c0_138, %c0_139], %281 {strides = array<i32>} : memref<1x8x32xf32, #tpu.memory_space<vmem>>, vector<1x8x32xf32>,
    return
  }
  func.func @transform_0(%arg0: i32, %arg1: i32) -> (i32, i32, i32) {
    %c0_i32 = arith.constant 0 : i32
    %c0_i32_0 = arith.constant 0 : i32
    %c0_i32_1 = arith.constant 0 : i32
    return %arg0, %c0_i32, %c0_i32_0 : i32, i32, i32
  }
  func.func @transform_1(%arg0: i32, %arg1: i32) -> (i32, i32, i32) {
    %c0_i32 = arith.constant 0 : i32
    %c0_i32_0 = arith.constant 0 : i32
    return %arg0, %arg1, %c0_i32 : i32, i32, i32
  }
  func.func @transform_2(%arg0: i32, %arg1: i32) -> (i32, i32, i32) {
    %c0_i32 = arith.constant 0 : i32
    %c0_i32_0 = arith.constant 0 : i32
    %c0_i32_1 = arith.constant 0 : i32
    return %arg0, %c0_i32, %c0_i32_0 : i32, i32, i32
  }
  func.func @transform_3(%arg0: i32, %arg1: i32) -> (i32, i32, i32) {
    %c0_i32 = arith.constant 0 : i32
    %c0_i32_0 = arith.constant 0 : i32
    return %arg0, %arg1, %c0_i32 : i32, i32, i32
  }
  func.func @transform_4(%arg0: i32, %arg1: i32) -> (i32, i32) {
    %c0_i32 = arith.constant 0 : i32
    %c0_i32_0 = arith.constant 0 : i32
    %c0_i32_1 = arith.constant 0 : i32
    return %c0_i32, %c0_i32_0 : i32, i32
  }
  func.func @transform_5(%arg0: i32, %arg1: i32) -> (i32, i32) {
    %c0_i32 = arith.constant 0 : i32
    %c0_i32_0 = arith.constant 0 : i32
    %c0_i32_1 = arith.constant 0 : i32
    return %c0_i32, %c0_i32_0 : i32, i32
  }
  func.func @transform_6(%arg0: i32, %arg1: i32) -> (i32, i32) {
    %c0_i32 = arith.constant 0 : i32
    %c0_i32_0 = arith.constant 0 : i32
    %c0_i32_1 = arith.constant 0 : i32
    return %c0_i32, %c0_i32_0 : i32, i32
  }
  func.func @transform_7(%arg0: i32, %arg1: i32) -> (i32, i32) {
    %c0_i32 = arith.constant 0 : i32
    %c0_i32_0 = arith.constant 0 : i32
    %c0_i32_1 = arith.constant 0 : i32
    return %c0_i32, %c0_i32_0 : i32, i32
  }
  func.func @transform_8(%arg0: i32, %arg1: i32) -> (i32, i32) {
    %c0_i32 = arith.constant 0 : i32
    %c0_i32_0 = arith.constant 0 : i32
    %c0_i32_1 = arith.constant 0 : i32
    return %c0_i32, %c0_i32_0 : i32, i32
  }
  func.func @transform_9(%arg0: i32, %arg1: i32) -> (i32, i32) {
    %c0_i32 = arith.constant 0 : i32
    %c0_i32_0 = arith.constant 0 : i32
    %c0_i32_1 = arith.constant 0 : i32
    return %c0_i32, %c0_i32_0 : i32, i32
  }
  func.func @transform_10(%arg0: i32, %arg1: i32) -> (i32, i32) {
    %c0_i32 = arith.constant 0 : i32
    %c0_i32_0 = arith.constant 0 : i32
    %c0_i32_1 = arith.constant 0 : i32
    return %c0_i32, %c0_i32_0 : i32, i32
  }
  func.func @transform_11(%arg0: i32, %arg1: i32) -> (i32, i32) {
    %c0_i32 = arith.constant 0 : i32
    %c0_i32_0 = arith.constant 0 : i32
    %c0_i32_1 = arith.constant 0 : i32
    return %c0_i32, %c0_i32_0 : i32, i32
  }
  func.func @transform_12(%arg0: i32, %arg1: i32) -> (i32, i32) {
    %c0_i32 = arith.constant 0 : i32
    %c0_i32_0 = arith.constant 0 : i32
    %c0_i32_1 = arith.constant 0 : i32
    return %c0_i32, %c0_i32_0 : i32, i32
  }
  func.func @transform_13(%arg0: i32, %arg1: i32) -> (i32, i32) {
    %c0_i32 = arith.constant 0 : i32
    %c0_i32_0 = arith.constant 0 : i32
    %c0_i32_1 = arith.constant 0 : i32
    return %c0_i32, %c0_i32_0 : i32, i32
  }
  func.func @transform_14(%arg0: i32, %arg1: i32) -> (i32, i32) {
    %c0_i32 = arith.constant 0 : i32
    %c0_i32_0 = arith.constant 0 : i32
    %c0_i32_1 = arith.constant 0 : i32
    return %c0_i32, %c0_i32_0 : i32, i32
  }
  func.func @transform_15(%arg0: i32, %arg1: i32) -> (i32, i32) {
    %c0_i32 = arith.constant 0 : i32
    %c0_i32_0 = arith.constant 0 : i32
    %c0_i32_1 = arith.constant 0 : i32
    return %c0_i32, %c0_i32_0 : i32, i32
  }
  func.func @transform_16(%arg0: i32, %arg1: i32) -> (i32, i32) {
    %c0_i32 = arith.constant 0 : i32
    %c0_i32_0 = arith.constant 0 : i32
    %c0_i32_1 = arith.constant 0 : i32
    return %c0_i32, %c0_i32_0 : i32, i32
  }
  func.func @transform_17(%arg0: i32, %arg1: i32) -> (i32, i32) {
    %c0_i32 = arith.constant 0 : i32
    %c0_i32_0 = arith.constant 0 : i32
    %c0_i32_1 = arith.constant 0 : i32
    return %c0_i32, %c0_i32_0 : i32, i32
  }
  func.func @transform_18(%arg0: i32, %arg1: i32) -> (i32, i32) {
    %c0_i32 = arith.constant 0 : i32
    %c0_i32_0 = arith.constant 0 : i32
    %c0_i32_1 = arith.constant 0 : i32
    return %c0_i32, %c0_i32_0 : i32, i32
  }
  func.func @transform_19(%arg0: i32, %arg1: i32) -> (i32, i32, i32) {
    %c0_i32 = arith.constant 0 : i32
    %c0_i32_0 = arith.constant 0 : i32
    return %arg0, %arg1, %c0_i32 : i32, i32, i32
  }
}

</mosaic_0001>

<llo_original>
// kernel: tpu_custom_call.1
$region0: #{tpu_custom_call.1}
  #allocation0 [shape = 'u32[]', space=smem, size = 0x4, offset = 0x4, fixed_abs, tag = 'smem constant byte address 0x4 - core index']
  #allocation1 [shape = 'u32[144,128]{1,0:T(1,128)}', space=vmem, size = 0x12000, scoped, tag = 'internal scratch']
  #allocation2 [shape = 'f32[8,32]{1,0:T(8,128)}', space=vmem, size = 0x1000, scoped, tag = 'scratch operand']
  #allocation3 [shape = 'f32[8,32]{1,0:T(8,128)}', space=vmem, size = 0x1000, scoped, tag = 'scratch operand']
  #allocation4 [shape = 'f32[8,32]{1,0:T(8,128)}', space=vmem, size = 0x1000, scoped, tag = 'scratch operand']
  %s0 = inlined_call_operand.vmem [shape: f32[2,16,32], index: 0, kind: input, shape index: {}]
  %s1 = inlined_call_operand.vmem [shape: f32[2,16,32], index: 1, kind: input, shape index: {}]
  %s2 = inlined_call_operand.vmem [shape: f32[2,16,3], index: 2, kind: input, shape index: {}]
  %s3 = inlined_call_operand.vmem [shape: f32[2,16,3], index: 3, kind: input, shape index: {}]
  %s4 = inlined_call_operand.vmem [shape: bf16[32,32], index: 4, kind: input, shape index: {}]
  %s5 = inlined_call_operand.vmem [shape: f32[1,32], index: 5, kind: input, shape index: {}]
  %s6 = inlined_call_operand.vmem [shape: bf16[32,32], index: 6, kind: input, shape index: {}]
  %s7 = inlined_call_operand.vmem [shape: bf16[32,32], index: 7, kind: input, shape index: {}]
  %s8 = inlined_call_operand.vmem [shape: bf16[32,32], index: 8, kind: input, shape index: {}]
  %s9 = inlined_call_operand.hbm [shape: bf16[3,32], index: 9, kind: input, shape index: {}]
  %s10 = inlined_call_operand.hbm [shape: f32[1,32], index: 10, kind: input, shape index: {}]
  %s11 = inlined_call_operand.vmem [shape: bf16[32,32], index: 11, kind: input, shape index: {}]
  %s12 = inlined_call_operand.hbm [shape: f32[1,32], index: 12, kind: input, shape index: {}]
  %s13 = inlined_call_operand.hbm [shape: bf16[32,64], index: 13, kind: input, shape index: {}]
  %s14 = inlined_call_operand.hbm [shape: f32[1,64], index: 14, kind: input, shape index: {}]
  %s15 = inlined_call_operand.vmem [shape: bf16[64,32], index: 15, kind: input, shape index: {}]
  %s16 = inlined_call_operand.vmem [shape: f32[1,32], index: 16, kind: input, shape index: {}]
  %s17 = inlined_call_operand.vmem [shape: bf16[32,32], index: 17, kind: input, shape index: {}]
  %s18 = inlined_call_operand.vmem [shape: f32[1,32], index: 18, kind: input, shape index: {}]
  %s19 = inlined_call_operand.hbm [shape: f32[2,16,32], index: 19, kind: output, shape index: {}]
  %s20 = sld [smem:[#allocation0]]
  $region129: #{tpu_custom_call.1} parent=0
    _
  %s22 = ssub.s32 1, %s20
  %s23 = scalar_select 0, %s22, %s20
  $region1: #{tpu_custom_call.1} parent=0
    #allocation5 [shape = 'u8[1024]{0}', space=vmem, size = 0x400, scoped, tag = 'input window, operand 9, single buffered']
    #allocation6 [shape = 's32[2]{0}', space=sflag, size = 0x8, scoped, tag = 'scoped memory for tpu_custom_call.1']
    #allocation7 [shape = 's32[2]{0}', space=sflag, size = 0x8, scoped, tag = 'scoped memory for tpu_custom_call.1']
    #allocation8 [shape = 'u8[512]{0}', space=vmem, size = 0x400, scoped, tag = 'input window, operand 10, single buffered']
    #allocation9 [shape = 's32[1]{0}', space=sflag, size = 0x4, scoped, tag = 'scoped memory for tpu_custom_call.1']
    #allocation10 [shape = 'u8[512]{0}', space=vmem, size = 0x400, scoped, tag = 'input window, operand 12, single buffered']
    #allocation11 [shape = 'u8[8192]{0}', space=vmem, size = 0x2000, scoped, tag = 'input window, operand 13, single buffered']
    #allocation12 [shape = 's32[1]{0}', space=sflag, size = 0x4, scoped, tag = 'scoped memory for tpu_custom_call.1']
    #allocation13 [shape = 'u8[512]{0}', space=vmem, size = 0x400, scoped, tag = 'input window, operand 14, single buffered']
    #allocation14 [shape = 'u8[8192]{0}', space=vmem, size = 0x2000, scoped, tag = 'output window, operand 0']
    %24 = vsyncpa [#allocation6], 0
    %25 = vsyncpa [#allocation9], 0
    %26 = vsyncpa [#allocation12], 0
    %27 = vsyncpa [#allocation7], 0
    %s28 = scalar_lea.sflag [#allocation7], 1
    %29 = vsyncpa %s28, 0
    loop: start=0, step=1, limit=6
    $region2: #{tpu_custom_call.1} parent=1 // loop_pre_header
      _
    $region3: #{tpu_custom_call.1} parent=1 // loop_header
      %s31 = sphi 0, %s35
      %p32 = scmp.ge.s32.totalorder %s31, 6
      %s38 = sphi 0, %s50
      %s39 = sphi 0, %s46
      %s40 = sphi 0, %s38
      %s41 = sphi 0, %s39
      %s42 = sphi 0, %s40
      %s43 = sphi 0, %s41
      %s53 = sphi 0, %s55
      %s56 = sphi 0, %s53
      %s57 = sphi 0, %s56
      %s73 = sphi 0, %s57
      %s81 = sphi 0, %s83
      %s84 = sphi 0, %s81
      %s85 = sphi 0, %s84
      %s101 = sphi 0, %s85
      %s107 = sphi 0, %s109
      %s110 = sphi 0, %s107
      %s111 = sphi 0, %s110
      %s127 = sphi 0, %s111
      %s135 = sphi 0, %s137
      %s138 = sphi 0, %s135
      %s139 = sphi 0, %s138
      %s155 = sphi 0, %s139
      %s159 = sphi 0, %s159
      %s161 = sphi 0, %s159
      %s162 = sphi 0, %s161
      %s176 = sphi 0, %s162
      %s180 = sphi 0, %s180
      %s182 = sphi 0, %s180
      %s183 = sphi 0, %s182
      %s197 = sphi 0, %s183
      %s201 = sphi 0, %s201
      %s203 = sphi 0, %s201
      %s204 = sphi 0, %s203
      %s218 = sphi 0, %s204
      %s222 = sphi 0, %s222
      %s224 = sphi 0, %s222
      %s225 = sphi 0, %s224
      %s239 = sphi 0, %s225
      %s243 = sphi 0, %s243
      %s245 = sphi 0, %s243
      %s246 = sphi 0, %s245
      %s260 = sphi 0, %s246
      %s264 = sphi 0, %s264
      %s266 = sphi 0, %s264
      %s267 = sphi 0, %s266
      %s281 = sphi 0, %s267
      %s285 = sphi 0, %s285
      %s287 = sphi 0, %s285
      %s288 = sphi 0, %s287
      %s302 = sphi 0, %s288
      %s306 = sphi 0, %s306
      %s308 = sphi 0, %s306
      %s309 = sphi 0, %s308
      %s323 = sphi 0, %s309
      %s327 = sphi 0, %s327
      %s329 = sphi 0, %s327
      %s330 = sphi 0, %s329
      %s344 = sphi 0, %s330
      %s348 = sphi 0, %s348
      %s350 = sphi 0, %s348
      %s351 = sphi 0, %s350
      %s365 = sphi 0, %s351
      %s369 = sphi 0, %s369
      %s371 = sphi 0, %s369
      %s372 = sphi 0, %s371
      %s386 = sphi 0, %s372
      %s390 = sphi 0, %s390
      %s392 = sphi 0, %s390
      %s393 = sphi 0, %s392
      %s407 = sphi 0, %s393
      %s411 = sphi 0, %s411
      %s413 = sphi 0, %s411
      %s414 = sphi 0, %s413
      %s428 = sphi 0, %s414
      %s432 = sphi 0, %s432
      %s434 = sphi 0, %s432
      %s435 = sphi 0, %s434
      %s449 = sphi 0, %s435
      %s453 = sphi 0, %s453
      %s455 = sphi 0, %s453
      %s456 = sphi 0, %s455
      %s470 = sphi 0, %s456
      %s478 = sphi 0, %s480
      %s481 = sphi 0, %s478
      %s482 = sphi 0, %s481
      %s498 = sphi 0, %s482
    $region4: #{tpu_custom_call.1} parent=1 // loop_header_branch
      %34 = sbr.rel (%p32) target = $region8
    $region5: #{tpu_custom_call.1} parent=1 // loop_body
      %s36 = ssub.s32 %s31, 1
      %s37 = ssub.s32 %s31, 2
      %s44 = sadd.s32 1, %s39
      %p45 = scmp.ge.s32.totalorder %s44, 2
      %s46 = scalar_select %p45, 0, %s44
      %s47 = sadd.s32 1, %s38
      %s48 = scalar_select %p45, %s47, %s38
      %p49 = scmp.ge.s32.totalorder %s48, 2
      %s50 = scalar_select %p49, 0, %s48
      %s51 = ssub.s32 %s38, %s50
      %p52 = scmp.eq.s32.totalorder %s51, 0
      %s54 = sadd.s32 %s53, 1
      %s55 = scalar_select %p52, %s53, %s54
      %p58 = pneg %p52
      %p59 = scmp.eq.s32.totalorder %s31, 3
      %p60 = por %p58, %p59
      %p61 = scmp.ne.s32.totalorder %s53, %s56
      %p62 = scmp.eq.s32.totalorder %s31, 0
      %p63 = por %p61, %p62
      %p64 = scmp.ne.s32.totalorder %s53, %s56
      %p65 = scmp.eq.s32.totalorder %s36, 3
      %p66 = por %p64, %p65
      %p67 = scmp.ne.s32.totalorder %s56, %s57
      %p68 = scmp.eq.s32.totalorder %s36, 0
      %p69 = por %p67, %p68
      %p70 = scmp.ne.s32.totalorder %s56, %s57
      %p71 = scmp.eq.s32.totalorder %s37, 3
      %p72 = por %p70, %p71
      %p74 = scmp.ne.s32.totalorder %s57, %s73
      %p75 = scmp.eq.s32.totalorder %s37, 0
      %p76 = por %p74, %p75
      %s77 = ssub.s32 %s38, %s50
      %s78 = ssub.s32 %s39, %s46
      %s79 = sor.u32 %s77, %s78
      %p80 = scmp.eq.s32.totalorder %s79, 0
      %s82 = sadd.s32 %s81, 1
      %s83 = scalar_select %p80, %s81, %s82
      %p86 = pneg %p80
      %p87 = scmp.eq.s32.totalorder %s31, 3
      %p88 = por %p86, %p87
      %p89 = scmp.ne.s32.totalorder %s81, %s84
      %p90 = scmp.eq.s32.totalorder %s31, 0
      %p91 = por %p89, %p90
      %p92 = scmp.ne.s32.totalorder %s81, %s84
      %p93 = scmp.eq.s32.totalorder %s36, 3
      %p94 = por %p92, %p93
      %p95 = scmp.ne.s32.totalorder %s84, %s85
      %p96 = scmp.eq.s32.totalorder %s36, 0
      %p97 = por %p95, %p96
      %p98 = scmp.ne.s32.totalorder %s84, %s85
      %p99 = scmp.eq.s32.totalorder %s37, 3
      %p100 = por %p98, %p99
      %p102 = scmp.ne.s32.totalorder %s85, %s101
      %p103 = scmp.eq.s32.totalorder %s37, 0
      %p104 = por %p102, %p103
      %s105 = ssub.s32 %s38, %s50
      %p106 = scmp.eq.s32.totalorder %s105, 0
      %s108 = sadd.s32 %s107, 1
      %s109 = scalar_select %p106, %s107, %s108
      %p112 = pneg %p106
      %p113 = scmp.eq.s32.totalorder %s31, 3
      %p114 = por %p112, %p113
      %p115 = scmp.ne.s32.totalorder %s107, %s110
      %p116 = scmp.eq.s32.totalorder %s31, 0
      %p117 = por %p115, %p116
      %p118 = scmp.ne.s32.totalorder %s107, %s110
      %p119 = scmp.eq.s32.totalorder %s36, 3
      %p120 = por %p118, %p119
      %p121 = scmp.ne.s32.totalorder %s110, %s111
      %p122 = scmp.eq.s32.totalorder %s36, 0
      %p123 = por %p121, %p122
      %p124 = scmp.ne.s32.totalorder %s110, %s111
      %p125 = scmp.eq.s32.totalorder %s37, 3
      %p126 = por %p124, %p125
      %p128 = scmp.ne.s32.totalorder %s111, %s127
      %p129 = scmp.eq.s32.totalorder %s37, 0
      %p130 = por %p128, %p129
      %s131 = ssub.s32 %s38, %s50
      %s132 = ssub.s32 %s39, %s46
      %s133 = sor.u32 %s131, %s132
      %p134 = scmp.eq.s32.totalorder %s133, 0
      %s136 = sadd.s32 %s135, 1
      %s137 = scalar_select %p134, %s135, %s136
      %p140 = pneg %p134
      %p141 = scmp.eq.s32.totalorder %s31, 3
      %p142 = por %p140, %p141
      %p143 = scmp.ne.s32.totalorder %s135, %s138
      %p144 = scmp.eq.s32.totalorder %s31, 0
      %p145 = por %p143, %p144
      %p146 = scmp.ne.s32.totalorder %s135, %s138
      %p147 = scmp.eq.s32.totalorder %s36, 3
      %p148 = por %p146, %p147
      %p149 = scmp.ne.s32.totalorder %s138, %s139
      %p150 = scmp.eq.s32.totalorder %s36, 0
      %p151 = por %p149, %p150
      %p152 = scmp.ne.s32.totalorder %s138, %s139
      %p153 = scmp.eq.s32.totalorder %s37, 3
      %p154 = por %p152, %p153
      %p156 = scmp.ne.s32.totalorder %s139, %s155
      %p157 = scmp.eq.s32.totalorder %s37, 0
      %p158 = por %p156, %p157
      %s160 = sadd.s32 %s159, 1
      %p163 = scmp.eq.s32.totalorder %s31, 3
      %p164 = scmp.ne.s32.totalorder %s159, %s161
      %p165 = scmp.eq.s32.totalorder %s31, 0
      %p166 = por %p164, %p165
      %p167 = scmp.ne.s32.totalorder %s159, %s161
      %p168 = scmp.eq.s32.totalorder %s36, 3
      %p169 = por %p167, %p168
      %p170 = scmp.ne.s32.totalorder %s161, %s162
      %p171 = scmp.eq.s32.totalorder %s36, 0
      %p172 = por %p170, %p171
      %p173 = scmp.ne.s32.totalorder %s161, %s162
      %p174 = scmp.eq.s32.totalorder %s37, 3
      %p175 = por %p173, %p174
      %p177 = scmp.ne.s32.totalorder %s162, %s176
      %p178 = scmp.eq.s32.totalorder %s37, 0
      %p179 = por %p177, %p178
      %s181 = sadd.s32 %s180, 1
      %p184 = scmp.eq.s32.totalorder %s31, 3
      %p185 = scmp.ne.s32.totalorder %s180, %s182
      %p186 = scmp.eq.s32.totalorder %s31, 0
      %p187 = por %p185, %p186
      %p188 = scmp.ne.s32.totalorder %s180, %s182
      %p189 = scmp.eq.s32.totalorder %s36, 3
      %p190 = por %p188, %p189
      %p191 = scmp.ne.s32.totalorder %s182, %s183
      %p192 = scmp.eq.s32.totalorder %s36, 0
      %p193 = por %p191, %p192
      %p194 = scmp.ne.s32.totalorder %s182, %s183
      %p195 = scmp.eq.s32.totalorder %s37, 3
      %p196 = por %p194, %p195
      %p198 = scmp.ne.s32.totalorder %s183, %s197
      %p199 = scmp.eq.s32.totalorder %s37, 0
      %p200 = por %p198, %p199
      %s202 = sadd.s32 %s201, 1
      %p205 = scmp.eq.s32.totalorder %s31, 3
      %p206 = scmp.ne.s32.totalorder %s201, %s203
      %p207 = scmp.eq.s32.totalorder %s31, 0
      %p208 = por %p206, %p207
      %p209 = scmp.ne.s32.totalorder %s201, %s203
      %p210 = scmp.eq.s32.totalorder %s36, 3
      %p211 = por %p209, %p210
      %p212 = scmp.ne.s32.totalorder %s203, %s204
      %p213 = scmp.eq.s32.totalorder %s36, 0
      %p214 = por %p212, %p213
      %p215 = scmp.ne.s32.totalorder %s203, %s204
      %p216 = scmp.eq.s32.totalorder %s37, 3
      %p217 = por %p215, %p216
      %p219 = scmp.ne.s32.totalorder %s204, %s218
      %p220 = scmp.eq.s32.totalorder %s37, 0
      %p221 = por %p219, %p220
      %s223 = sadd.s32 %s222, 1
      %p226 = scmp.eq.s32.totalorder %s31, 3
      %p227 = scmp.ne.s32.totalorder %s222, %s224
      %p228 = scmp.eq.s32.totalorder %s31, 0
      %p229 = por %p227, %p228
      %p230 = scmp.ne.s32.totalorder %s222, %s224
      %p231 = scmp.eq.s32.totalorder %s36, 3
      %p232 = por %p230, %p231
      %p233 = scmp.ne.s32.totalorder %s224, %s225
      %p234 = scmp.eq.s32.totalorder %s36, 0
      %p235 = por %p233, %p234
      %p236 = scmp.ne.s32.totalorder %s224, %s225
      %p237 = scmp.eq.s32.totalorder %s37, 3
      %p238 = por %p236, %p237
      %p240 = scmp.ne.s32.totalorder %s225, %s239
      %p241 = scmp.eq.s32.totalorder %s37, 0
      %p242 = por %p240, %p241
      %s244 = sadd.s32 %s243, 1
      %p247 = scmp.eq.s32.totalorder %s31, 3
      %p248 = scmp.ne.s32.totalorder %s243, %s245
      %p249 = scmp.eq.s32.totalorder %s31, 0
      %p250 = por %p248, %p249
      %p251 = scmp.ne.s32.totalorder %s243, %s245
      %p252 = scmp.eq.s32.totalorder %s36, 3
      %p253 = por %p251, %p252
      %p254 = scmp.ne.s32.totalorder %s245, %s246
      %p255 = scmp.eq.s32.totalorder %s36, 0
      %p256 = por %p254, %p255
      %p257 = scmp.ne.s32.totalorder %s245, %s246
      %p258 = scmp.eq.s32.totalorder %s37, 3
      %p259 = por %p257, %p258
      %p261 = scmp.ne.s32.totalorder %s246, %s260
      %p262 = scmp.eq.s32.totalorder %s37, 0
      %p263 = por %p261, %p262
      %s265 = sadd.s32 %s264, 1
      %p268 = scmp.eq.s32.totalorder %s31, 3
      %p269 = scmp.ne.s32.totalorder %s264, %s266
      %p270 = scmp.eq.s32.totalorder %s31, 0
      %p271 = por %p269, %p270
      %p272 = scmp.ne.s32.totalorder %s264, %s266
      %p273 = scmp.eq.s32.totalorder %s36, 3
      %p274 = por %p272, %p273
      %p275 = scmp.ne.s32.totalorder %s266, %s267
      %p276 = scmp.eq.s32.totalorder %s36, 0
      %p277 = por %p275, %p276
      %p278 = scmp.ne.s32.totalorder %s266, %s267
      %p279 = scmp.eq.s32.totalorder %s37, 3
      %p280 = por %p278, %p279
      %p282 = scmp.ne.s32.totalorder %s267, %s281
      %p283 = scmp.eq.s32.totalorder %s37, 0
      %p284 = por %p282, %p283
      %s286 = sadd.s32 %s285, 1
      %p289 = scmp.eq.s32.totalorder %s31, 3
      %p290 = scmp.ne.s32.totalorder %s285, %s287
      %p291 = scmp.eq.s32.totalorder %s31, 0
      %p292 = por %p290, %p291
      %p293 = scmp.ne.s32.totalorder %s285, %s287
      %p294 = scmp.eq.s32.totalorder %s36, 3
      %p295 = por %p293, %p294
      %p296 = scmp.ne.s32.totalorder %s287, %s288
      %p297 = scmp.eq.s32.totalorder %s36, 0
      %p298 = por %p296, %p297
      %p299 = scmp.ne.s32.totalorder %s287, %s288
      %p300 = scmp.eq.s32.totalorder %s37, 3
      %p301 = por %p299, %p300
      %p303 = scmp.ne.s32.totalorder %s288, %s302
      %p304 = scmp.eq.s32.totalorder %s37, 0
      %p305 = por %p303, %p304
      %s307 = sadd.s32 %s306, 1
      %p310 = scmp.eq.s32.totalorder %s31, 3
      %p311 = scmp.ne.s32.totalorder %s306, %s308
      %p312 = scmp.eq.s32.totalorder %s31, 0
      %p313 = por %p311, %p312
      %p314 = scmp.ne.s32.totalorder %s306, %s308
      %p315 = scmp.eq.s32.totalorder %s36, 3
      %p316 = por %p314, %p315
      %p317 = scmp.ne.s32.totalorder %s308, %s309
      %p318 = scmp.eq.s32.totalorder %s36, 0
      %p319 = por %p317, %p318
      %p320 = scmp.ne.s32.totalorder %s308, %s309
      %p321 = scmp.eq.s32.totalorder %s37, 3
      %p322 = por %p320, %p321
      %p324 = scmp.ne.s32.totalorder %s309, %s323
      %p325 = scmp.eq.s32.totalorder %s37, 0
      %p326 = por %p324, %p325
      %s328 = sadd.s32 %s327, 1
      %p331 = scmp.eq.s32.totalorder %s31, 3
      %p332 = scmp.ne.s32.totalorder %s327, %s329
      %p333 = scmp.eq.s32.totalorder %s31, 0
      %p334 = por %p332, %p333
      %p335 = scmp.ne.s32.totalorder %s327, %s329
      %p336 = scmp.eq.s32.totalorder %s36, 3
      %p337 = por %p335, %p336
      %p338 = scmp.ne.s32.totalorder %s329, %s330
      %p339 = scmp.eq.s32.totalorder %s36, 0
      %p340 = por %p338, %p339
      %p341 = scmp.ne.s32.totalorder %s329, %s330
      %p342 = scmp.eq.s32.totalorder %s37, 3
      %p343 = por %p341, %p342
      %p345 = scmp.ne.s32.totalorder %s330, %s344
      %p346 = scmp.eq.s32.totalorder %s37, 0
      %p347 = por %p345, %p346
      %s349 = sadd.s32 %s348, 1
      %p352 = scmp.eq.s32.totalorder %s31, 3
      %p353 = scmp.ne.s32.totalorder %s348, %s350
      %p354 = scmp.eq.s32.totalorder %s31, 0
      %p355 = por %p353, %p354
      %p356 = scmp.ne.s32.totalorder %s348, %s350
      %p357 = scmp.eq.s32.totalorder %s36, 3
      %p358 = por %p356, %p357
      %p359 = scmp.ne.s32.totalorder %s350, %s351
      %p360 = scmp.eq.s32.totalorder %s36, 0
      %p361 = por %p359, %p360
      %p362 = scmp.ne.s32.totalorder %s350, %s351
      %p363 = scmp.eq.s32.totalorder %s37, 3
      %p364 = por %p362, %p363
      %p366 = scmp.ne.s32.totalorder %s351, %s365
      %p367 = scmp.eq.s32.totalorder %s37, 0
      %p368 = por %p366, %p367
      %s370 = sadd.s32 %s369, 1
      %p373 = scmp.eq.s32.totalorder %s31, 3
      %p374 = scmp.ne.s32.totalorder %s369, %s371
      %p375 = scmp.eq.s32.totalorder %s31, 0
      %p376 = por %p374, %p375
      %p377 = scmp.ne.s32.totalorder %s369, %s371
      %p378 = scmp.eq.s32.totalorder %s36, 3
      %p379 = por %p377, %p378
      %p380 = scmp.ne.s32.totalorder %s371, %s372
      %p381 = scmp.eq.s32.totalorder %s36, 0
      %p382 = por %p380, %p381
      %p383 = scmp.ne.s32.totalorder %s371, %s372
      %p384 = scmp.eq.s32.totalorder %s37, 3
      %p385 = por %p383, %p384
      %p387 = scmp.ne.s32.totalorder %s372, %s386
      %p388 = scmp.eq.s32.totalorder %s37, 0
      %p389 = por %p387, %p388
      %s391 = sadd.s32 %s390, 1
      %p394 = scmp.eq.s32.totalorder %s31, 3
      %p395 = scmp.ne.s32.totalorder %s390, %s392
      %p396 = scmp.eq.s32.totalorder %s31, 0
      %p397 = por %p395, %p396
      %p398 = scmp.ne.s32.totalorder %s390, %s392
      %p399 = scmp.eq.s32.totalorder %s36, 3
      %p400 = por %p398, %p399
      %p401 = scmp.ne.s32.totalorder %s392, %s393
      %p402 = scmp.eq.s32.totalorder %s36, 0
      %p403 = por %p401, %p402
      %p404 = scmp.ne.s32.totalorder %s392, %s393
      %p405 = scmp.eq.s32.totalorder %s37, 3
      %p406 = por %p404, %p405
      %p408 = scmp.ne.s32.totalorder %s393, %s407
      %p409 = scmp.eq.s32.totalorder %s37, 0
      %p410 = por %p408, %p409
      %s412 = sadd.s32 %s411, 1
      %p415 = scmp.eq.s32.totalorder %s31, 3
      %p416 = scmp.ne.s32.totalorder %s411, %s413
      %p417 = scmp.eq.s32.totalorder %s31, 0
      %p418 = por %p416, %p417
      %p419 = scmp.ne.s32.totalorder %s411, %s413
      %p420 = scmp.eq.s32.totalorder %s36, 3
      %p421 = por %p419, %p420
      %p422 = scmp.ne.s32.totalorder %s413, %s414
      %p423 = scmp.eq.s32.totalorder %s36, 0
      %p424 = por %p422, %p423
      %p425 = scmp.ne.s32.totalorder %s413, %s414
      %p426 = scmp.eq.s32.totalorder %s37, 3
      %p427 = por %p425, %p426
      %p429 = scmp.ne.s32.totalorder %s414, %s428
      %p430 = scmp.eq.s32.totalorder %s37, 0
      %p431 = por %p429, %p430
      %s433 = sadd.s32 %s432, 1
      %p436 = scmp.eq.s32.totalorder %s31, 3
      %p437 = scmp.ne.s32.totalorder %s432, %s434
      %p438 = scmp.eq.s32.totalorder %s31, 0
      %p439 = por %p437, %p438
      %p440 = scmp.ne.s32.totalorder %s432, %s434
      %p441 = scmp.eq.s32.totalorder %s36, 3
      %p442 = por %p440, %p441
      %p443 = scmp.ne.s32.totalorder %s434, %s435
      %p444 = scmp.eq.s32.totalorder %s36, 0
      %p445 = por %p443, %p444
      %p446 = scmp.ne.s32.totalorder %s434, %s435
      %p447 = scmp.eq.s32.totalorder %s37, 3
      %p448 = por %p446, %p447
      %p450 = scmp.ne.s32.totalorder %s435, %s449
      %p451 = scmp.eq.s32.totalorder %s37, 0
      %p452 = por %p450, %p451
      %s454 = sadd.s32 %s453, 1
      %p457 = scmp.eq.s32.totalorder %s31, 3
      %p458 = scmp.ne.s32.totalorder %s453, %s455
      %p459 = scmp.eq.s32.totalorder %s31, 0
      %p460 = por %p458, %p459
      %p461 = scmp.ne.s32.totalorder %s453, %s455
      %p462 = scmp.eq.s32.totalorder %s36, 3
      %p463 = por %p461, %p462
      %p464 = scmp.ne.s32.totalorder %s455, %s456
      %p465 = scmp.eq.s32.totalorder %s36, 0
      %p466 = por %p464, %p465
      %p467 = scmp.ne.s32.totalorder %s455, %s456
      %p468 = scmp.eq.s32.totalorder %s37, 3
      %p469 = por %p467, %p468
      %p471 = scmp.ne.s32.totalorder %s456, %s470
      %p472 = scmp.eq.s32.totalorder %s37, 0
      %p473 = por %p471, %p472
      %s474 = ssub.s32 %s38, %s50
      %s475 = ssub.s32 %s39, %s46
      %s476 = sor.u32 %s474, %s475
      %p477 = scmp.eq.s32.totalorder %s476, 0
      %s479 = sadd.s32 %s478, 1
      %s480 = scalar_select %p477, %s478, %s479
      %p483 = pneg %p477
      %p484 = scmp.eq.s32.totalorder %s31, 3
      %p485 = por %p483, %p484
      %p486 = scmp.ne.s32.totalorder %s478, %s481
      %p487 = scmp.eq.s32.totalorder %s31, 0
      %p488 = por %p486, %p487
      %p489 = scmp.ne.s32.totalorder %s478, %s481
      %p490 = scmp.eq.s32.totalorder %s36, 3
      %p491 = por %p489, %p490
      %p492 = scmp.ne.s32.totalorder %s481, %s482
      %p493 = scmp.eq.s32.totalorder %s36, 0
      %p494 = por %p492, %p493
      %p495 = scmp.ne.s32.totalorder %s481, %s482
      %p496 = scmp.eq.s32.totalorder %s37, 3
      %p497 = por %p495, %p496
      %p499 = scmp.ne.s32.totalorder %s482, %s498
      %p500 = scmp.eq.s32.totalorder %s37, 0
      %p501 = por %p499, %p500
      %p502 = scmp.le.s32.totalorder 1, %s31
      %p503 = scmp.lt.s32.totalorder %s31, 5
      %p504 = pnand %p502, %p503
      %p505 = pneg %p504
      // Predicated region
      $region9: #{tpu_custom_call.1} parent=5 // pred_check
        _
      $region10: #{tpu_custom_call.1} parent=5 // pred_check_branch
        %507 = sbr.rel (%p504) target = $region12
      $region11: #{tpu_custom_call.1} parent=5 // pred_region
        %s508 = ssub.s32 %s31, 1
        // Predicated region
        $region13: #{tpu_custom_call.1} parent=11 // pred_check
          %p509 = pneg %p172
        $region14: #{tpu_custom_call.1} parent=11 // pred_check_branch
          %511 = sbr.rel (%p509) target = $region16
        $region15: #{tpu_custom_call.1} parent=11 // pred_region
          _
        $region16: #{tpu_custom_call.1} parent=11 // pred_fallthru
          _
        // Predicated region
        $region17: #{tpu_custom_call.1} parent=11 // pred_check
          %p512 = pneg %p193
        $region18: #{tpu_custom_call.1} parent=11 // pred_check_branch
          %514 = sbr.rel (%p512) target = $region20
        $region19: #{tpu_custom_call.1} parent=11 // pred_region
          _
        $region20: #{tpu_custom_call.1} parent=11 // pred_fallthru
          _
        // Predicated region
        $region21: #{tpu_custom_call.1} parent=11 // pred_check
          %p515 = pneg %p214
        $region22: #{tpu_custom_call.1} parent=11 // pred_check_branch
          %517 = sbr.rel (%p515) target = $region24
        $region23: #{tpu_custom_call.1} parent=11 // pred_region
          _
        $region24: #{tpu_custom_call.1} parent=11 // pred_fallthru
          _
        // Predicated region
        $region25: #{tpu_custom_call.1} parent=11 // pred_check
          %p518 = pneg %p235
        $region26: #{tpu_custom_call.1} parent=11 // pred_check_branch
          %520 = sbr.rel (%p518) target = $region28
        $region27: #{tpu_custom_call.1} parent=11 // pred_region
          _
        $region28: #{tpu_custom_call.1} parent=11 // pred_fallthru
          _
        // Predicated region
        $region29: #{tpu_custom_call.1} parent=11 // pred_check
          %p521 = pneg %p256
        $region30: #{tpu_custom_call.1} parent=11 // pred_check_branch
          %523 = sbr.rel (%p521) target = $region32
        $region31: #{tpu_custom_call.1} parent=11 // pred_region
          _
        $region32: #{tpu_custom_call.1} parent=11 // pred_fallthru
          _
        // Predicated region
        $region33: #{tpu_custom_call.1} parent=11 // pred_check
          %p524 = pneg %p277
        $region34: #{tpu_custom_call.1} parent=11 // pred_check_branch
          %526 = sbr.rel (%p524) target = $region36
        $region35: #{tpu_custom_call.1} parent=11 // pred_region
          %s528 = ssub.s32 32, 32
          %529 = vsyncadd [#allocation6], %s528
          %s531 = sshll.u32 [#allocation5], 4
          %s532 = int_to_ptr.vmem [resolvable:$true] %s531
          %534 = dma.hbm_to_vmem [thread:$0]  %s9, 32, %s532, [#allocation6]
        $region36: #{tpu_custom_call.1} parent=11 // pred_fallthru
          _
        // Predicated region
        $region37: #{tpu_custom_call.1} parent=11 // pred_check
          %p535 = pneg %p298
        $region38: #{tpu_custom_call.1} parent=11 // pred_check_branch
          %537 = sbr.rel (%p535) target = $region40
        $region39: #{tpu_custom_call.1} parent=11 // pred_region
          %s539 = ssub.s32 16, 16
          %540 = vsyncadd [#allocation9], %s539
          %s542 = sshll.u32 [#allocation8], 4
          %s543 = int_to_ptr.vmem [resolvable:$true] %s542
          %545 = dma.hbm_to_vmem [thread:$0]  %s10, 16, %s543, [#allocation9]
        $region40: #{tpu_custom_call.1} parent=11 // pred_fallthru
          _
        // Predicated region
        $region41: #{tpu_custom_call.1} parent=11 // pred_check
          %p546 = pneg %p319
        $region42: #{tpu_custom_call.1} parent=11 // pred_check_branch
          %548 = sbr.rel (%p546) target = $region44
        $region43: #{tpu_custom_call.1} parent=11 // pred_region
          _
        $region44: #{tpu_custom_call.1} parent=11 // pred_fallthru
          _
        // Predicated region
        $region45: #{tpu_custom_call.1} parent=11 // pred_check
          %p549 = pneg %p340
        $region46: #{tpu_custom_call.1} parent=11 // pred_check_branch
          %551 = sbr.rel (%p549) target = $region48
        $region47: #{tpu_custom_call.1} parent=11 // pred_region
          %s553 = ssub.s32 16, 16
          %554 = vsyncadd [#allocation9], %s553
          %s556 = sshll.u32 [#allocation10], 4
          %s557 = int_to_ptr.vmem [resolvable:$true] %s556
          %559 = dma.hbm_to_vmem [thread:$0]  %s12, 16, %s557, [#allocation9]
        $region48: #{tpu_custom_call.1} parent=11 // pred_fallthru
          _
        // Predicated region
        $region49: #{tpu_custom_call.1} parent=11 // pred_check
          %p560 = pneg %p361
        $region50: #{tpu_custom_call.1} parent=11 // pred_check_branch
          %562 = sbr.rel (%p560) target = $region52
        $region51: #{tpu_custom_call.1} parent=11 // pred_region
          %s564 = ssub.s32 256, 256
          %565 = vsyncadd [#allocation12], %s564
          %s566 = sshll.u32 [#allocation11], 4
          %s567 = int_to_ptr.vmem [resolvable:$true] %s566
          %572 = dma.hbm_to_vmem [thread:$0]  %s13, 256, %s567, [#allocation12], 64, 64, 4
        $region52: #{tpu_custom_call.1} parent=11 // pred_fallthru
          _
        // Predicated region
        $region53: #{tpu_custom_call.1} parent=11 // pred_check
          %p573 = pneg %p382
        $region54: #{tpu_custom_call.1} parent=11 // pred_check_branch
          %575 = sbr.rel (%p573) target = $region56
        $region55: #{tpu_custom_call.1} parent=11 // pred_region
          %s577 = ssub.s32 16, 16
          %578 = vsyncadd [#allocation12], %s577
          %s580 = sshll.u32 [#allocation13], 4
          %s581 = int_to_ptr.vmem [resolvable:$true] %s580
          %583 = dma.hbm_to_vmem [thread:$0]  %s14, 16, %s581, [#allocation12]
        $region56: #{tpu_custom_call.1} parent=11 // pred_fallthru
          _
        // Predicated region
        $region57: #{tpu_custom_call.1} parent=11 // pred_check
          %p584 = pneg %p403
        $region58: #{tpu_custom_call.1} parent=11 // pred_check_branch
          %586 = sbr.rel (%p584) target = $region60
        $region59: #{tpu_custom_call.1} parent=11 // pred_region
          _
        $region60: #{tpu_custom_call.1} parent=11 // pred_fallthru
          _
        // Predicated region
        $region61: #{tpu_custom_call.1} parent=11 // pred_check
          %p587 = pneg %p424
        $region62: #{tpu_custom_call.1} parent=11 // pred_check_branch
          %589 = sbr.rel (%p587) target = $region64
        $region63: #{tpu_custom_call.1} parent=11 // pred_region
          _
        $region64: #{tpu_custom_call.1} parent=11 // pred_fallthru
          _
        // Predicated region
        $region65: #{tpu_custom_call.1} parent=11 // pred_check
          %p590 = pneg %p445
        $region66: #{tpu_custom_call.1} parent=11 // pred_check_branch
          %592 = sbr.rel (%p590) target = $region68
        $region67: #{tpu_custom_call.1} parent=11 // pred_region
          _
        $region68: #{tpu_custom_call.1} parent=11 // pred_fallthru
          _
        // Predicated region
        $region69: #{tpu_custom_call.1} parent=11 // pred_check
          %p593 = pneg %p466
        $region70: #{tpu_custom_call.1} parent=11 // pred_check_branch
          %595 = sbr.rel (%p593) target = $region72
        $region71: #{tpu_custom_call.1} parent=11 // pred_region
          _
        $region72: #{tpu_custom_call.1} parent=11 // pred_fallthru
          _
      $region12: #{tpu_custom_call.1} parent=5 // pred_fallthru
        _
      %p596 = scmp.lt.s32.totalorder %s31, 4
      // Predicated region
      $region73: #{tpu_custom_call.1} parent=5 // pred_check
        %p597 = pneg %p596
      $region74: #{tpu_custom_call.1} parent=5 // pred_check_branch
        %599 = sbr.rel (%p597) target = $region76
      $region75: #{tpu_custom_call.1} parent=5 // pred_region
        // Predicated region
        $region77: #{tpu_custom_call.1} parent=75 // pred_check
          %p600 = pneg %p63
        $region78: #{tpu_custom_call.1} parent=75 // pred_check_branch
          %602 = sbr.rel (%p600) target = $region80
        $region79: #{tpu_custom_call.1} parent=75 // pred_region
          %p603 = scmp.lt.s32.totalorder %s38, 1
          %s604 = scalar_select %p603, %s38, 1
          %s605 = smul.addr %s604, 2
          %s606 = smul.addr %s605, 8
          %s607 = scalar_lea.vmem %s0, %s606
        $region80: #{tpu_custom_call.1} parent=75 // pred_fallthru
          _
        // Predicated region
        $region81: #{tpu_custom_call.1} parent=75 // pred_check
          %p608 = pneg %p91
        $region82: #{tpu_custom_call.1} parent=75 // pred_check_branch
          %610 = sbr.rel (%p608) target = $region84
        $region83: #{tpu_custom_call.1} parent=75 // pred_region
          %p611 = scmp.lt.s32.totalorder %s38, 1
          %s612 = scalar_select %p611, %s38, 1
          %p613 = scmp.lt.s32.totalorder %s39, 1
          %s614 = scalar_select %p613, %s39, 1
          %s615 = smul.addr %s612, 2
          %s616 = sadd.s32 %s614, %s615
          %s617 = smul.addr %s616, 8
          %s618 = scalar_lea.vmem %s1, %s617
        $region84: #{tpu_custom_call.1} parent=75 // pred_fallthru
          _
        // Predicated region
        $region85: #{tpu_custom_call.1} parent=75 // pred_check
          %p619 = pneg %p117
        $region86: #{tpu_custom_call.1} parent=75 // pred_check_branch
          %621 = sbr.rel (%p619) target = $region88
        $region87: #{tpu_custom_call.1} parent=75 // pred_region
          %p622 = scmp.lt.s32.totalorder %s38, 1
          %s623 = scalar_select %p622, %s38, 1
          %s624 = smul.addr %s623, 2
          %s625 = smul.addr %s624, 8
          %s626 = scalar_lea.vmem %s2, %s625
        $region88: #{tpu_custom_call.1} parent=75 // pred_fallthru
          _
        // Predicated region
        $region89: #{tpu_custom_call.1} parent=75 // pred_check
          %p627 = pneg %p145
        $region90: #{tpu_custom_call.1} parent=75 // pred_check_branch
          %629 = sbr.rel (%p627) target = $region92
        $region91: #{tpu_custom_call.1} parent=75 // pred_region
          %p630 = scmp.lt.s32.totalorder %s38, 1
          %s631 = scalar_select %p630, %s38, 1
          %p632 = scmp.lt.s32.totalorder %s39, 1
          %s633 = scalar_select %p632, %s39, 1
          %s634 = smul.addr %s631, 2
          %s635 = sadd.s32 %s633, %s634
          %s636 = smul.addr %s635, 8
          %s637 = scalar_lea.vmem %s3, %s636
        $region92: #{tpu_custom_call.1} parent=75 // pred_fallthru
          _
      $region76: #{tpu_custom_call.1} parent=5 // pred_fallthru
        _
      %p638 = scmp.le.s32.totalorder 1, %s31
      %p639 = scmp.lt.s32.totalorder %s31, 5
      %p640 = pnand %p638, %p639
      %p641 = pneg %p640
      // Predicated region
      $region93: #{tpu_custom_call.1} parent=5 // pred_check
        _
      $region94: #{tpu_custom_call.1} parent=5 // pred_check_branch
        %643 = sbr.rel (%p640) target = $region96
      $region95: #{tpu_custom_call.1} parent=5 // pred_region
        %s644 = ssub.s32 %s31, 1
        // Predicated region
        $region97: #{tpu_custom_call.1} parent=95 // pred_check
          %p645 = pneg %p277
        $region98: #{tpu_custom_call.1} parent=95 // pred_check_branch
          %647 = sbr.rel (%p645) target = $region100
        $region99: #{tpu_custom_call.1} parent=95 // pred_region
          %648 = dma.done [#allocation6], 32
        $region100: #{tpu_custom_call.1} parent=95 // pred_fallthru
          _
        // Predicated region
        $region101: #{tpu_custom_call.1} parent=95 // pred_check
          %p649 = pneg %p298
        $region102: #{tpu_custom_call.1} parent=95 // pred_check_branch
          %651 = sbr.rel (%p649) target = $region104
        $region103: #{tpu_custom_call.1} parent=95 // pred_region
          %652 = dma.done [#allocation9], 16
        $region104: #{tpu_custom_call.1} parent=95 // pred_fallthru
          _
        // Predicated region
        $region105: #{tpu_custom_call.1} parent=95 // pred_check
          %p653 = pneg %p340
        $region106: #{tpu_custom_call.1} parent=95 // pred_check_branch
          %655 = sbr.rel (%p653) target = $region108
        $region107: #{tpu_custom_call.1} parent=95 // pred_region
          %656 = dma.done [#allocation9], 16
        $region108: #{tpu_custom_call.1} parent=95 // pred_fallthru
          _
        // Predicated region
        $region109: #{tpu_custom_call.1} parent=95 // pred_check
          %p657 = pneg %p361
        $region110: #{tpu_custom_call.1} parent=95 // pred_check_branch
          %659 = sbr.rel (%p657) target = $region112
        $region111: #{tpu_custom_call.1} parent=95 // pred_region
          %660 = dma.done [#allocation12], 256
        $region112: #{tpu_custom_call.1} parent=95 // pred_fallthru
          _
        // Predicated region
        $region113: #{tpu_custom_call.1} parent=95 // pred_check
          %p661 = pneg %p382
        $region114: #{tpu_custom_call.1} parent=95 // pred_check_branch
          %663 = sbr.rel (%p661) target = $region116
        $region115: #{tpu_custom_call.1} parent=95 // pred_region
          %664 = dma.done [#allocation12], 16
        $region116: #{tpu_custom_call.1} parent=95 // pred_fallthru
          _
        %p665 = scmp.lt.s32.totalorder %s40, 1
        %s666 = scalar_select %p665, %s40, 1
        %s667 = smul.addr %s666, 2
        %s668 = smul.addr %s667, 8
        %s669 = scalar_lea.vmem %s0, %s668
        %p670 = pneg %p69
        %p671 = pneg %p66
        %p672 = scmp.lt.s32.totalorder %s40, 1
        %s673 = scalar_select %p672, %s40, 1
        %p674 = scmp.lt.s32.totalorder %s41, 1
        %s675 = scalar_select %p674, %s41, 1
        %s676 = smul.addr %s673, 2
        %s677 = sadd.s32 %s675, %s676
        %s678 = smul.addr %s677, 8
        %s679 = scalar_lea.vmem %s1, %s678
        %p680 = pneg %p97
        %p681 = pneg %p94
        %p682 = scmp.lt.s32.totalorder %s40, 1
        %s683 = scalar_select %p682, %s40, 1
        %s684 = smul.addr %s683, 2
        %s685 = smul.addr %s684, 8
        %s686 = scalar_lea.vmem %s2, %s685
        %p687 = pneg %p123
        %p688 = pneg %p120
        %p689 = scmp.lt.s32.totalorder %s40, 1
        %s690 = scalar_select %p689, %s40, 1
        %p691 = scmp.lt.s32.totalorder %s41, 1
        %s692 = scalar_select %p691, %s41, 1
        %s693 = smul.addr %s690, 2
        %s694 = sadd.s32 %s692, %s693
        %s695 = smul.addr %s694, 8
        %s696 = scalar_lea.vmem %s3, %s695
        %p697 = pneg %p151
        %p698 = pneg %p148
        %p699 = pneg %p172
        %p700 = pneg %p169
        %p701 = pneg %p193
        %p702 = pneg %p190
        %p703 = pneg %p214
        %p704 = pneg %p211
        %p705 = pneg %p235
        %p706 = pneg %p232
        %p707 = pneg %p256
        %p708 = pneg %p253
        %p709 = pneg %p277
        %p710 = pneg %p274
        %p711 = pneg %p298
        %p712 = pneg %p295
        %p713 = pneg %p319
        %p714 = pneg %p316
        %p715 = pneg %p340
        %p716 = pneg %p337
        %p717 = pneg %p361
        %p718 = pneg %p358
        %p719 = pneg %p382
        %p720 = pneg %p379
        %p721 = pneg %p403
        %p722 = pneg %p400
        %p723 = pneg %p424
        %p724 = pneg %p421
        %p725 = pneg %p445
        %p726 = pneg %p442
        %p727 = pneg %p466
        %p728 = pneg %p463
        %p729 = pneg %p494
        %p730 = pneg %p491
        %s731 = sand.u32 %s481, 1
        %s732 = scalar_lea.sflag [#allocation7], %s731
        %s733 = sand.u32 %s481, 1
        %s734 = smul.addr %s733, 8
        %s735 = scalar_lea.vmem [#allocation14], %s734
        %p736 = scmp.lt.s32.totalorder %s40, 1
        %s737 = scalar_select %p736, %s40, 1
        %s738 = smul.addr %s737, 2
        %s739 = smul.addr %s738, 8
        %s740 = scalar_lea.vmem %s0, %s739
        %p741 = scmp.lt.s32.totalorder %s40, 1
        %s742 = scalar_select %p741, %s40, 1
        %p743 = scmp.lt.s32.totalorder %s41, 1
        %s744 = scalar_select %p743, %s41, 1
        %s745 = smul.addr %s742, 2
        %s746 = sadd.s32 %s744, %s745
        %s747 = smul.addr %s746, 8
        %s748 = scalar_lea.vmem %s1, %s747
        %p749 = scmp.lt.s32.totalorder %s40, 1
        %s750 = scalar_select %p749, %s40, 1
        %s751 = smul.addr %s750, 2
        %s752 = smul.addr %s751, 8
        %s753 = scalar_lea.vmem %s2, %s752
        %p754 = scmp.lt.s32.totalorder %s40, 1
        %s755 = scalar_select %p754, %s40, 1
        %p756 = scmp.lt.s32.totalorder %s41, 1
        %s757 = scalar_select %p756, %s41, 1
        %s758 = smul.addr %s755, 2
        %s759 = sadd.s32 %s757, %s758
        %s760 = smul.addr %s759, 8
        %s761 = scalar_lea.vmem %s3, %s760
        %v763 = vld [vmem:[%s740] sm:$0xff]
        %v764 = vld [vmem:[%s740 + $0x8] sm:$0xff]
        %v765 = vld [vmem:[%s748] sm:$0xff]
        %v766 = vld [vmem:[%s753] sm:$0xff]
        %v767 = vld [vmem:[%s753 + $0x8] sm:$0xff]
        %v768 = vld [vmem:[%s761] sm:$0xff]
        %v769 = vpack.c.bf16 %v764, %v763
        %v770 = vld [vmem:[%s4] sm:$0xf]
        %v771 = vld [vmem:[%s4 + $0x4] sm:$0xf]
        %v772 = vld [vmem:[%s4 + $0x8] sm:$0xf]
        %v773 = vld [vmem:[%s4 + $0xc] sm:$0xf]
        %v774 = vld [vmem:[%s5] sm:$0x1]
        %v776 = vlaneseq
        %v777 = vshrl.u32 %v776, 7
        %v778 = vsub.s32 0, %v777
        %v779 = vrot.slane %v774, %v778
        %v785 = vunpack.c.l.b16 %v770
        %v786 = vunpack.c.l.b16 %v771
        %v787 = vunpack.c.l.b16 %v772
        %v788 = vunpack.c.l.b16 %v773
        %v789 = vpack.c.b16 %v786, %v785
        %v790 = vpack.c.b16 %v788, %v787
        %vm793 = vcmask 261120
        %v795 = vsel %vm793, %v769, 0
        %797 = vmatprep.subr.bf16.mxu0 0
        %798 = vmatpush1.bf16.msra.mxu0 %v789
        %799 = vmatprep.subr.bf16.mxu0 0
        %800 = vmatpush1.bf16.msra.mxu0 %v790
        %801 = vmatprep.subr.bf16.mxu0 0
        %802 = vmatpush1.bf16.msra.mxu0 0
        %803 = vmatprep.subr.bf16.mxu0 0
        %804 = vmatpush1.bf16.msra.mxu0 0
        %805 = vmatprep.subr.bf16.mxu0 0
        %806 = vmatpush1.bf16.msra.mxu0 0
        %807 = vmatprep.subr.bf16.mxu0 0
        %808 = vmatpush1.bf16.msra.mxu0 0
        %809 = vmatprep.subr.bf16.mxu0 0
        %810 = vmatpush1.bf16.msra.mxu0 0
        %811 = vmatprep.subr.bf16.mxu0 0
        %812 = vmatpush1.bf16.msra.mxu0 0
        %813 = vmatprep.subr.bf16.mxu0 0
        %814 = vmatpush1.bf16.msra.mxu0 0
        %815 = vmatprep.subr.bf16.mxu0 0
        %816 = vmatpush1.bf16.msra.mxu0 0
        %817 = vmatprep.subr.bf16.mxu0 0
        %818 = vmatpush1.bf16.msra.mxu0 0
        %819 = vmatprep.subr.bf16.mxu0 0
        %820 = vmatpush1.bf16.msra.mxu0 0
        %821 = vmatprep.subr.bf16.mxu0 0
        %822 = vmatpush1.bf16.msra.mxu0 0
        %823 = vmatprep.subr.bf16.mxu0 0
        %824 = vmatpush1.bf16.msra.mxu0 0
        %825 = vmatprep.subr.bf16.mxu0 0
        %826 = vmatpush1.bf16.msra.mxu0 0
        %827 = vmatprep.subr.bf16.mxu0 0
        %828 = vmatpush1.bf16.msra.mxu0 0
        %829 = vmatprep.mubr.bf16.mxu0 0
        %830 = vmatmul.mubr.bf16.gmra.mrb[0].mxu0 %v795
        %v831 = vpop.f32.mrb[0].mxu0
        %v832 = vadd.f32 %v779, %v831
        %v833 = vpop.f32.mrb[0].mxu0
        %v834 = vpop.f32.mrb[0].mxu0
        %v835 = vadd.f32 %v779, %v834
        %v836 = vpop.f32.mrb[0].mxu0
        %837 = vdwg.mxu0
        %v838 = vpack.c.bf16 %v765, %v765
        %v840 = vsel %vm793, %v838, 0
        %842 = vmatprep.subr.bf16.mxu0 0
        %843 = vmatpush1.bf16.msra.mxu0 %v789
        %844 = vmatprep.subr.bf16.mxu0 0
        %845 = vmatpush1.bf16.msra.mxu0 %v790
        %846 = vmatprep.subr.bf16.mxu0 0
        %847 = vmatpush1.bf16.msra.mxu0 0
        %848 = vmatprep.subr.bf16.mxu0 0
        %849 = vmatpush1.bf16.msra.mxu0 0
        %850 = vmatprep.subr.bf16.mxu0 0
        %851 = vmatpush1.bf16.msra.mxu0 0
        %852 = vmatprep.subr.bf16.mxu0 0
        %853 = vmatpush1.bf16.msra.mxu0 0
        %854 = vmatprep.subr.bf16.mxu0 0
        %855 = vmatpush1.bf16.msra.mxu0 0
        %856 = vmatprep.subr.bf16.mxu0 0
        %857 = vmatpush1.bf16.msra.mxu0 0
        %858 = vmatprep.subr.bf16.mxu0 0
        %859 = vmatpush1.bf16.msra.mxu0 0
        %860 = vmatprep.subr.bf16.mxu0 0
        %861 = vmatpush1.bf16.msra.mxu0 0
        %862 = vmatprep.subr.bf16.mxu0 0
        %863 = vmatpush1.bf16.msra.mxu0 0
        %864 = vmatprep.subr.bf16.mxu0 0
        %865 = vmatpush1.bf16.msra.mxu0 0
        %866 = vmatprep.subr.bf16.mxu0 0
        %867 = vmatpush1.bf16.msra.mxu0 0
        %868 = vmatprep.subr.bf16.mxu0 0
        %869 = vmatpush1.bf16.msra.mxu0 0
        %870 = vmatprep.subr.bf16.mxu0 0
        %871 = vmatpush1.bf16.msra.mxu0 0
        %872 = vmatprep.subr.bf16.mxu0 0
        %873 = vmatpush1.bf16.msra.mxu0 0
        %874 = vmatprep.mubr.bf16.mxu0 0
        %875 = vmatmul.mubr.bf16.gmra.mrb[0].mxu0 %v840
        %v876 = vpop.f32.mrb[0].mxu0
        %v877 = vadd.f32 %v779, %v876
        %v878 = vpop.f32.mrb[0].mxu0
        %v879 = vpop.f32.mrb[0].mxu0
        %v880 = vpop.f32.mrb[0].mxu0
        %881 = vdwg.mxu0
        %v882 = vpack.c.bf16 %v835, %v832
        %v883 = vld [vmem:[%s7] sm:$0xf]
        %v884 = vld [vmem:[%s7 + $0x4] sm:$0xf]
        %v885 = vld [vmem:[%s7 + $0x8] sm:$0xf]
        %v886 = vld [vmem:[%s7 + $0xc] sm:$0xf]
        %v891 = vunpack.c.l.b16 %v883
        %v892 = vunpack.c.l.b16 %v884
        %v893 = vunpack.c.l.b16 %v885
        %v894 = vunpack.c.l.b16 %v886
        %v895 = vpack.c.b16 %v892, %v891
        %v896 = vpack.c.b16 %v894, %v893
        %v900 = vsel %vm793, %v882, 0
        %902 = vmatprep.subr.bf16.mxu0 0
        %903 = vmatpush1.bf16.msra.mxu0 %v895
        %904 = vmatprep.subr.bf16.mxu0 0
        %905 = vmatpush1.bf16.msra.mxu0 %v896
        %906 = vmatprep.subr.bf16.mxu0 0
        %907 = vmatpush1.bf16.msra.mxu0 0
        %908 = vmatprep.subr.bf16.mxu0 0
        %909 = vmatpush1.bf16.msra.mxu0 0
        %910 = vmatprep.subr.bf16.mxu0 0
        %911 = vmatpush1.bf16.msra.mxu0 0
        %912 = vmatprep.subr.bf16.mxu0 0
        %913 = vmatpush1.bf16.msra.mxu0 0
        %914 = vmatprep.subr.bf16.mxu0 0
        %915 = vmatpush1.bf16.msra.mxu0 0
        %916 = vmatprep.subr.bf16.mxu0 0
        %917 = vmatpush1.bf16.msra.mxu0 0
        %918 = vmatprep.subr.bf16.mxu0 0
        %919 = vmatpush1.bf16.msra.mxu0 0
        %920 = vmatprep.subr.bf16.mxu0 0
        %921 = vmatpush1.bf16.msra.mxu0 0
        %922 = vmatprep.subr.bf16.mxu0 0
        %923 = vmatpush1.bf16.msra.mxu0 0
        %924 = vmatprep.subr.bf16.mxu0 0
        %925 = vmatpush1.bf16.msra.mxu0 0
        %926 = vmatprep.subr.bf16.mxu0 0
        %927 = vmatpush1.bf16.msra.mxu0 0
        %928 = vmatprep.subr.bf16.mxu0 0
        %929 = vmatpush1.bf16.msra.mxu0 0
        %930 = vmatprep.subr.bf16.mxu0 0
        %931 = vmatpush1.bf16.msra.mxu0 0
        %932 = vmatprep.subr.bf16.mxu0 0
        %933 = vmatpush1.bf16.msra.mxu0 0
        %934 = vmatprep.mubr.bf16.mxu0 0
        %935 = vmatmul.mubr.bf16.gmra.mrb[0].mxu0 %v900
        %v936 = vpop.f32.mrb[0].mxu0
        %v937 = vadd.f32 0.0, %v936
        %v938 = vpop.f32.mrb[0].mxu0
        %v939 = vpop.f32.mrb[0].mxu0
        %v940 = vadd.f32 0.0, %v939
        %v941 = vpop.f32.mrb[0].mxu0
        %942 = vdwg.mxu0
        %v943 = vld [vmem:[%s8] sm:$0xf]
        %v944 = vld [vmem:[%s8 + $0x4] sm:$0xf]
        %v945 = vld [vmem:[%s8 + $0x8] sm:$0xf]
        %v946 = vld [vmem:[%s8 + $0xc] sm:$0xf]
        %v951 = vunpack.c.l.b16 %v943
        %v952 = vunpack.c.l.b16 %v944
        %v953 = vunpack.c.l.b16 %v945
        %v954 = vunpack.c.l.b16 %v946
        %v955 = vpack.c.b16 %v952, %v951
        %v956 = vpack.c.b16 %v954, %v953
        %959 = vmatprep.subr.bf16.mxu0 0
        %960 = vmatpush1.bf16.msra.mxu0 %v955
        %961 = vmatprep.subr.bf16.mxu0 0
        %962 = vmatpush1.bf16.msra.mxu0 %v956
        %963 = vmatprep.subr.bf16.mxu0 0
        %964 = vmatpush1.bf16.msra.mxu0 0
        %965 = vmatprep.subr.bf16.mxu0 0
        %966 = vmatpush1.bf16.msra.mxu0 0
        %967 = vmatprep.subr.bf16.mxu0 0
        %968 = vmatpush1.bf16.msra.mxu0 0
        %969 = vmatprep.subr.bf16.mxu0 0
        %970 = vmatpush1.bf16.msra.mxu0 0
        %971 = vmatprep.subr.bf16.mxu0 0
        %972 = vmatpush1.bf16.msra.mxu0 0
        %973 = vmatprep.subr.bf16.mxu0 0
        %974 = vmatpush1.bf16.msra.mxu0 0
        %975 = vmatprep.subr.bf16.mxu0 0
        %976 = vmatpush1.bf16.msra.mxu0 0
        %977 = vmatprep.subr.bf16.mxu0 0
        %978 = vmatpush1.bf16.msra.mxu0 0
        %979 = vmatprep.subr.bf16.mxu0 0
        %980 = vmatpush1.bf16.msra.mxu0 0
        %981 = vmatprep.subr.bf16.mxu0 0
        %982 = vmatpush1.bf16.msra.mxu0 0
        %983 = vmatprep.subr.bf16.mxu0 0
        %984 = vmatpush1.bf16.msra.mxu0 0
        %985 = vmatprep.subr.bf16.mxu0 0
        %986 = vmatpush1.bf16.msra.mxu0 0
        %987 = vmatprep.subr.bf16.mxu0 0
        %988 = vmatpush1.bf16.msra.mxu0 0
        %989 = vmatprep.subr.bf16.mxu0 0
        %990 = vmatpush1.bf16.msra.mxu0 0
        %991 = vmatprep.mubr.bf16.mxu0 0
        %992 = vmatmul.mubr.bf16.gmra.mrb[0].mxu0 %v900
        %v993 = vpop.f32.mrb[0].mxu0
        %v994 = vadd.f32 0.0, %v993
        %v995 = vpop.f32.mrb[0].mxu0
        %v996 = vpop.f32.mrb[0].mxu0
        %v997 = vadd.f32 0.0, %v996
        %v998 = vpop.f32.mrb[0].mxu0
        %999 = vdwg.mxu0
        %v1000 = vpack.c.bf16 %v877, %v877
        %v1001 = vld [vmem:[%s6] sm:$0xf]
        %v1002 = vld [vmem:[%s6 + $0x4] sm:$0xf]
        %v1003 = vld [vmem:[%s6 + $0x8] sm:$0xf]
        %v1004 = vld [vmem:[%s6 + $0xc] sm:$0xf]
        %v1009 = vunpack.c.l.b16 %v1001
        %v1010 = vunpack.c.l.b16 %v1002
        %v1011 = vunpack.c.l.b16 %v1003
        %v1012 = vunpack.c.l.b16 %v1004
        %v1013 = vpack.c.b16 %v1010, %v1009
        %v1014 = vpack.c.b16 %v1012, %v1011
        %v1018 = vsel %vm793, %v1000, 0
        %1020 = vmatprep.subr.bf16.mxu0 0
        %1021 = vmatpush1.bf16.msra.mxu0 %v1013
        %1022 = vmatprep.subr.bf16.mxu0 0
        %1023 = vmatpush1.bf16.msra.mxu0 %v1014
        %1024 = vmatprep.subr.bf16.mxu0 0
        %1025 = vmatpush1.bf16.msra.mxu0 0
        %1026 = vmatprep.subr.bf16.mxu0 0
        %1027 = vmatpush1.bf16.msra.mxu0 0
        %1028 = vmatprep.subr.bf16.mxu0 0
        %1029 = vmatpush1.bf16.msra.mxu0 0
        %1030 = vmatprep.subr.bf16.mxu0 0
        %1031 = vmatpush1.bf16.msra.mxu0 0
        %1032 = vmatprep.subr.bf16.mxu0 0
        %1033 = vmatpush1.bf16.msra.mxu0 0
        %1034 = vmatprep.subr.bf16.mxu0 0
        %1035 = vmatpush1.bf16.msra.mxu0 0
        %1036 = vmatprep.subr.bf16.mxu0 0
        %1037 = vmatpush1.bf16.msra.mxu0 0
        %1038 = vmatprep.subr.bf16.mxu0 0
        %1039 = vmatpush1.bf16.msra.mxu0 0
        %1040 = vmatprep.subr.bf16.mxu0 0
        %1041 = vmatpush1.bf16.msra.mxu0 0
        %1042 = vmatprep.subr.bf16.mxu0 0
        %1043 = vmatpush1.bf16.msra.mxu0 0
        %1044 = vmatprep.subr.bf16.mxu0 0
        %1045 = vmatpush1.bf16.msra.mxu0 0
        %1046 = vmatprep.subr.bf16.mxu0 0
        %1047 = vmatpush1.bf16.msra.mxu0 0
        %1048 = vmatprep.subr.bf16.mxu0 0
        %1049 = vmatpush1.bf16.msra.mxu0 0
        %1050 = vmatprep.subr.bf16.mxu0 0
        %1051 = vmatpush1.bf16.msra.mxu0 0
        %1052 = vmatprep.mubr.bf16.mxu0 0
        %1053 = vmatmul.mubr.bf16.gmra.mrb[0].mxu0 %v1018
        %v1054 = vpop.f32.mrb[0].mxu0
        %v1055 = vadd.f32 0.0, %v1054
        %v1056 = vpop.f32.mrb[0].mxu0
        %v1057 = vpop.f32.mrb[0].mxu0
        %v1058 = vpop.f32.mrb[0].mxu0
        %1059 = vdwg.mxu0
        %1060 = vst.msk [vmem:[#allocation2] sm:$0xff] %vm793, %v1055
        %v1061 = vpack.c.bf16 %v768, %v768
        %v1062 = vld [vmem:[#allocation5] sm:$0x3]
        %vm1063 = vcmask 23552
        %v1065 = vsel %vm1063, %v1061, 0
        %vm1067 = vcmask 1040384
        %vm1068 = vcmask 1041408
        %v1069 = vsel %vm1067, 4294967295, 65535
        %v1070 = vsel %vm1068, %v1069, 0
        %v1072 = vand.u32 %v1062, %v1070
        %1074 = vmatprep.subr.bf16.mxu0 0
        %1075 = vmatpush1.bf16.msra.mxu0 %v1072
        %1076 = vmatprep.subr.bf16.mxu0 0
        %1077 = vmatpush1.bf16.msra.mxu0 0
        %1078 = vmatprep.subr.bf16.mxu0 0
        %1079 = vmatpush1.bf16.msra.mxu0 0
        %1080 = vmatprep.subr.bf16.mxu0 0
        %1081 = vmatpush1.bf16.msra.mxu0 0
        %1082 = vmatprep.subr.bf16.mxu0 0
        %1083 = vmatpush1.bf16.msra.mxu0 0
        %1084 = vmatprep.subr.bf16.mxu0 0
        %1085 = vmatpush1.bf16.msra.mxu0 0
        %1086 = vmatprep.subr.bf16.mxu0 0
        %1087 = vmatpush1.bf16.msra.mxu0 0
        %1088 = vmatprep.subr.bf16.mxu0 0
        %1089 = vmatpush1.bf16.msra.mxu0 0
        %1090 = vmatprep.subr.bf16.mxu0 0
        %1091 = vmatpush1.bf16.msra.mxu0 0
        %1092 = vmatprep.subr.bf16.mxu0 0
        %1093 = vmatpush1.bf16.msra.mxu0 0
        %1094 = vmatprep.subr.bf16.mxu0 0
        %1095 = vmatpush1.bf16.msra.mxu0 0
        %1096 = vmatprep.subr.bf16.mxu0 0
        %1097 = vmatpush1.bf16.msra.mxu0 0
        %1098 = vmatprep.subr.bf16.mxu0 0
        %1099 = vmatpush1.bf16.msra.mxu0 0
        %1100 = vmatprep.subr.bf16.mxu0 0
        %1101 = vmatpush1.bf16.msra.mxu0 0
        %1102 = vmatprep.subr.bf16.mxu0 0
        %1103 = vmatpush1.bf16.msra.mxu0 0
        %1104 = vmatprep.subr.bf16.mxu0 0
        %1105 = vmatpush1.bf16.msra.mxu0 0
        %1106 = vmatprep.mubr.bf16.mxu0 0
        %1107 = vmatmul.mubr.bf16.gmra.mrb[0].mxu0 %v1065
        %v1108 = vpop.f32.mrb[0].mxu0
        %v1109 = vadd.f32 0.0, %v1108
        %v1110 = vpop.f32.mrb[0].mxu0
        %v1111 = vpop.f32.mrb[0].mxu0
        %v1112 = vpop.f32.mrb[0].mxu0
        %1113 = vdwg.mxu0
        %1114 = vst.msk [vmem:[#allocation3] sm:$0xff] %vm793, %v1109
        %v1115 = vpack.c.bf16 %v767, %v766
        %v1116 = vld [vmem:[#allocation5] sm:$0x3]
        %v1118 = vsel %vm1063, %v1115, 0
        %v1121 = vand.u32 %v1116, %v1070
        %1123 = vmatprep.subr.bf16.mxu0 0
        %1124 = vmatpush1.bf16.msra.mxu0 %v1121
        %1125 = vmatprep.subr.bf16.mxu0 0
        %1126 = vmatpush1.bf16.msra.mxu0 0
        %1127 = vmatprep.subr.bf16.mxu0 0
        %1128 = vmatpush1.bf16.msra.mxu0 0
        %1129 = vmatprep.subr.bf16.mxu0 0
        %1130 = vmatpush1.bf16.msra.mxu0 0
        %1131 = vmatprep.subr.bf16.mxu0 0
        %1132 = vmatpush1.bf16.msra.mxu0 0
        %1133 = vmatprep.subr.bf16.mxu0 0
        %1134 = vmatpush1.bf16.msra.mxu0 0
        %1135 = vmatprep.subr.bf16.mxu0 0
        %1136 = vmatpush1.bf16.msra.mxu0 0
        %1137 = vmatprep.subr.bf16.mxu0 0
        %1138 = vmatpush1.bf16.msra.mxu0 0
        %1139 = vmatprep.subr.bf16.mxu0 0
        %1140 = vmatpush1.bf16.msra.mxu0 0
        %1141 = vmatprep.subr.bf16.mxu0 0
        %1142 = vmatpush1.bf16.msra.mxu0 0
        %1143 = vmatprep.subr.bf16.mxu0 0
        %1144 = vmatpush1.bf16.msra.mxu0 0
        %1145 = vmatprep.subr.bf16.mxu0 0
        %1146 = vmatpush1.bf16.msra.mxu0 0
        %1147 = vmatprep.subr.bf16.mxu0 0
        %1148 = vmatpush1.bf16.msra.mxu0 0
        %1149 = vmatprep.subr.bf16.mxu0 0
        %1150 = vmatpush1.bf16.msra.mxu0 0
        %1151 = vmatprep.subr.bf16.mxu0 0
        %1152 = vmatpush1.bf16.msra.mxu0 0
        %1153 = vmatprep.subr.bf16.mxu0 0
        %1154 = vmatpush1.bf16.msra.mxu0 0
        %1155 = vmatprep.mubr.bf16.mxu0 0
        %1156 = vmatmul.mubr.bf16.gmra.mrb[0].mxu0 %v1118
        %v1157 = vpop.f32.mrb[0].mxu0
        %v1158 = vadd.f32 0.0, %v1157
        %v1159 = vpop.f32.mrb[0].mxu0
        %v1160 = vpop.f32.mrb[0].mxu0
        %v1161 = vadd.f32 0.0, %v1160
        %v1162 = vpop.f32.mrb[0].mxu0
        %1163 = vdwg.mxu0
        %v1164 = vld [vmem:[#allocation8] sm:$0x1]
        %v1165 = vld [vmem:[#allocation3] sm:$0x1]
        %v1166 = vld [vmem:[#allocation2] sm:$0x1]
        %v1167 = vlaneseq
        %v1168 = vshrl.u32 %v1167, 7
        %v1169 = vsub.s32 0, %v1168
        %v1170 = vrot.slane %v1165, %v1169
        %v1171 = vsub.f32 %v1170, %v1158
        %v1172 = vsub.f32 %v1170, %v1161
        %v1174 = vlaneseq
        %v1175 = vshrl.u32 %v1174, 7
        %v1176 = vsub.s32 0, %v1175
        %v1177 = vrot.slane %v1164, %v1176
        %v1179 = vadd.f32 %v1171, %v1177
        %v1180 = vadd.f32 %v1172, %v1177
        %v1181 = vmax.f32 %v1179, 0.0
        %v1182 = vmax.f32 %v1180, 0.0
        %v1183 = vlaneseq
        %v1184 = vshrl.u32 %v1183, 7
        %v1185 = vsub.s32 0, %v1184
        %v1186 = vrot.slane %v1166, %v1185
        %v1187 = vsub.f32 %v1186, %v937
        %v1188 = vsub.f32 %v1186, %v940
        %v1189 = vld [vmem:[#allocation3 + $0x1] sm:$0x1]
        %v1190 = vld [vmem:[#allocation2 + $0x1] sm:$0x1]
        %v1191 = vlaneseq
        %v1192 = vshrl.u32 %v1191, 7
        %v1193 = vsub.s32 0, %v1192
        %v1194 = vrot.slane %v1189, %v1193
        %v1195 = vsub.f32 %v1194, %v1158
        %v1196 = vsub.f32 %v1194, %v1161
        %v1197 = vadd.f32 %v1195, %v1177
        %v1198 = vadd.f32 %v1196, %v1177
        %v1199 = vmax.f32 %v1197, 0.0
        %v1200 = vmax.f32 %v1198, 0.0
        %v1201 = vlaneseq
        %v1202 = vshrl.u32 %v1201, 7
        %v1203 = vsub.s32 0, %v1202
        %v1204 = vrot.slane %v1190, %v1203
        %v1205 = vsub.f32 %v1204, %v937
        %v1206 = vsub.f32 %v1204, %v940
        %v1207 = vld [vmem:[#allocation3 + $0x2] sm:$0x1]
        %v1208 = vld [vmem:[#allocation2 + $0x2] sm:$0x1]
        %v1209 = vlaneseq
        %v1210 = vshrl.u32 %v1209, 7
        %v1211 = vsub.s32 0, %v1210
        %v1212 = vrot.slane %v1207, %v1211
        %v1213 = vsub.f32 %v1212, %v1158
        %v1214 = vsub.f32 %v1212, %v1161
        %v1215 = vadd.f32 %v1213, %v1177
        %v1216 = vadd.f32 %v1214, %v1177
        %v1217 = vmax.f32 %v1215, 0.0
        %v1218 = vmax.f32 %v1216, 0.0
        %v1219 = vlaneseq
        %v1220 = vshrl.u32 %v1219, 7
        %v1221 = vsub.s32 0, %v1220
        %v1222 = vrot.slane %v1208, %v1221
        %v1223 = vsub.f32 %v1222, %v937
        %v1224 = vsub.f32 %v1222, %v940
        %v1225 = vld [vmem:[#allocation3 + $0x3] sm:$0x1]
        %v1226 = vld [vmem:[#allocation2 + $0x3] sm:$0x1]
        %v1227 = vlaneseq
        %v1228 = vshrl.u32 %v1227, 7
        %v1229 = vsub.s32 0, %v1228
        %v1230 = vrot.slane %v1225, %v1229
        %v1231 = vsub.f32 %v1230, %v1158
        %v1232 = vsub.f32 %v1230, %v1161
        %v1233 = vadd.f32 %v1231, %v1177
        %v1234 = vadd.f32 %v1232, %v1177
        %v1235 = vmax.f32 %v1233, 0.0
        %v1236 = vmax.f32 %v1234, 0.0
        %v1237 = vlaneseq
        %v1238 = vshrl.u32 %v1237, 7
        %v1239 = vsub.s32 0, %v1238
        %v1240 = vrot.slane %v1226, %v1239
        %v1241 = vsub.f32 %v1240, %v937
        %v1242 = vsub.f32 %v1240, %v940
        %v1243 = vld [vmem:[#allocation3 + $0x4] sm:$0x1]
        %v1244 = vld [vmem:[#allocation2 + $0x4] sm:$0x1]
        %v1245 = vlaneseq
        %v1246 = vshrl.u32 %v1245, 7
        %v1247 = vsub.s32 0, %v1246
        %v1248 = vrot.slane %v1243, %v1247
        %v1249 = vsub.f32 %v1248, %v1158
        %v1250 = vsub.f32 %v1248, %v1161
        %v1251 = vadd.f32 %v1249, %v1177
        %v1252 = vadd.f32 %v1250, %v1177
        %v1253 = vmax.f32 %v1251, 0.0
        %v1254 = vmax.f32 %v1252, 0.0
        %v1255 = vlaneseq
        %v1256 = vshrl.u32 %v1255, 7
        %v1257 = vsub.s32 0, %v1256
        %v1258 = vrot.slane %v1244, %v1257
        %v1259 = vsub.f32 %v1258, %v937
        %v1260 = vsub.f32 %v1258, %v940
        %v1261 = vld [vmem:[#allocation3 + $0x5] sm:$0x1]
        %v1262 = vld [vmem:[#allocation2 + $0x5] sm:$0x1]
        %v1263 = vlaneseq
        %v1264 = vshrl.u32 %v1263, 7
        %v1265 = vsub.s32 0, %v1264
        %v1266 = vrot.slane %v1261, %v1265
        %v1267 = vsub.f32 %v1266, %v1158
        %v1268 = vsub.f32 %v1266, %v1161
        %v1269 = vadd.f32 %v1267, %v1177
        %v1270 = vadd.f32 %v1268, %v1177
        %v1271 = vmax.f32 %v1269, 0.0
        %v1272 = vmax.f32 %v1270, 0.0
        %v1273 = vlaneseq
        %v1274 = vshrl.u32 %v1273, 7
        %v1275 = vsub.s32 0, %v1274
        %v1276 = vrot.slane %v1262, %v1275
        %v1277 = vsub.f32 %v1276, %v937
        %v1278 = vsub.f32 %v1276, %v940
        %v1279 = vld [vmem:[#allocation3 + $0x6] sm:$0x1]
        %v1280 = vld [vmem:[#allocation2 + $0x6] sm:$0x1]
        %v1281 = vlaneseq
        %v1282 = vshrl.u32 %v1281, 7
        %v1283 = vsub.s32 0, %v1282
        %v1284 = vrot.slane %v1279, %v1283
        %v1285 = vsub.f32 %v1284, %v1158
        %v1286 = vsub.f32 %v1284, %v1161
        %v1287 = vadd.f32 %v1285, %v1177
        %v1288 = vadd.f32 %v1286, %v1177
        %v1289 = vmax.f32 %v1287, 0.0
        %v1290 = vmax.f32 %v1288, 0.0
        %v1291 = vlaneseq
        %v1292 = vshrl.u32 %v1291, 7
        %v1293 = vsub.s32 0, %v1292
        %v1294 = vrot.slane %v1280, %v1293
        %v1295 = vsub.f32 %v1294, %v937
        %v1296 = vsub.f32 %v1294, %v940
        %v1297 = vld [vmem:[#allocation3 + $0x7] sm:$0x1]
        %v1298 = vld [vmem:[#allocation2 + $0x7] sm:$0x1]
        %v1299 = vlaneseq
        %v1300 = vshrl.u32 %v1299, 7
        %v1301 = vsub.s32 0, %v1300
        %v1302 = vrot.slane %v1297, %v1301
        %v1303 = vsub.f32 %v1302, %v1158
        %v1304 = vsub.f32 %v1302, %v1161
        %v1305 = vadd.f32 %v1303, %v1177
        %v1306 = vadd.f32 %v1304, %v1177
        %v1307 = vmax.f32 %v1305, 0.0
        %v1308 = vmax.f32 %v1306, 0.0
        %v1309 = vlaneseq
        %v1310 = vshrl.u32 %v1309, 7
        %v1311 = vsub.s32 0, %v1310
        %v1312 = vrot.slane %v1298, %v1311
        %v1313 = vsub.f32 %v1312, %v937
        %v1314 = vsub.f32 %v1312, %v940
        %v1315 = vpack.c.bf16 %v1182, %v1181
        %v1316 = vpack.c.bf16 %v1200, %v1199
        %v1317 = vpack.c.bf16 %v1218, %v1217
        %v1318 = vpack.c.bf16 %v1236, %v1235
        %v1319 = vpack.c.bf16 %v1254, %v1253
        %v1320 = vpack.c.bf16 %v1272, %v1271
        %v1321 = vpack.c.bf16 %v1290, %v1289
        %v1322 = vpack.c.bf16 %v1308, %v1307
        %v1323 = vld [vmem:[%s11] sm:$0xf]
        %v1324 = vld [vmem:[%s11 + $0x4] sm:$0xf]
        %v1325 = vld [vmem:[%s11 + $0x8] sm:$0xf]
        %v1326 = vld [vmem:[%s11 + $0xc] sm:$0xf]
        %v1327 = vld [vmem:[#allocation10] sm:$0x1]
        %v1329 = vlaneseq
        %v1330 = vshrl.u32 %v1329, 7
        %v1331 = vsub.s32 0, %v1330
        %v1332 = vrot.slane %v1327, %v1331
        %v1338 = vunpack.c.l.b16 %v1323
        %v1339 = vunpack.c.l.b16 %v1324
        %v1340 = vunpack.c.l.b16 %v1325
        %v1341 = vunpack.c.l.b16 %v1326
        %v1342 = vpack.c.b16 %v1339, %v1338
        %v1343 = vpack.c.b16 %v1341, %v1340
        %v1347 = vsel %vm793, %v1315, 0
        %v1350 = vsel %vm793, %v1316, 0
        %v1353 = vsel %vm793, %v1317, 0
        %v1356 = vsel %vm793, %v1318, 0
        %v1359 = vsel %vm793, %v1319, 0
        %v1362 = vsel %vm793, %v1320, 0
        %v1365 = vsel %vm793, %v1321, 0
        %v1368 = vsel %vm793, %v1322, 0
        %1370 = vmatprep.subr.bf16.mxu0 0
        %1371 = vmatpush1.bf16.msra.mxu0 %v1342
        %1372 = vmatprep.subr.bf16.mxu0 0
        %1373 = vmatpush1.bf16.msra.mxu0 %v1343
        %1374 = vmatprep.subr.bf16.mxu0 0
        %1375 = vmatpush1.bf16.msra.mxu0 0
        %1376 = vmatprep.subr.bf16.mxu0 0
        %1377 = vmatpush1.bf16.msra.mxu0 0
        %1378 = vmatprep.subr.bf16.mxu0 0
        %1379 = vmatpush1.bf16.msra.mxu0 0
        %1380 = vmatprep.subr.bf16.mxu0 0
        %1381 = vmatpush1.bf16.msra.mxu0 0
        %1382 = vmatprep.subr.bf16.mxu0 0
        %1383 = vmatpush1.bf16.msra.mxu0 0
        %1384 = vmatprep.subr.bf16.mxu0 0
        %1385 = vmatpush1.bf16.msra.mxu0 0
        %1386 = vmatprep.subr.bf16.mxu0 0
        %1387 = vmatpush1.bf16.msra.mxu0 0
        %1388 = vmatprep.subr.bf16.mxu0 0
        %1389 = vmatpush1.bf16.msra.mxu0 0
        %1390 = vmatprep.subr.bf16.mxu0 0
        %1391 = vmatpush1.bf16.msra.mxu0 0
        %1392 = vmatprep.subr.bf16.mxu0 0
        %1393 = vmatpush1.bf16.msra.mxu0 0
        %1394 = vmatprep.subr.bf16.mxu0 0
        %1395 = vmatpush1.bf16.msra.mxu0 0
        %1396 = vmatprep.subr.bf16.mxu0 0
        %1397 = vmatpush1.bf16.msra.mxu0 0
        %1398 = vmatprep.subr.bf16.mxu0 0
        %1399 = vmatpush1.bf16.msra.mxu0 0
        %1400 = vmatprep.subr.bf16.mxu0 0
        %1401 = vmatpush1.bf16.msra.mxu0 0
        %1402 = vmatprep.mubr.bf16.mxu0 0
        %1403 = vmatmul.mubr.bf16.gmra.mrb[0].mxu0 %v1347
        %v1404 = vpop.f32.mrb[0].mxu0
        %v1405 = vadd.f32 %v1332, %v1404
        %v1406 = vpop.f32.mrb[0].mxu0
        %v1407 = vpop.f32.mrb[0].mxu0
        %v1408 = vadd.f32 %v1332, %v1407
        %v1409 = vpop.f32.mrb[0].mxu0
        %1410 = vmatprep.mubr.bf16.mxu0 0
        %1411 = vmatmul.mubr.bf16.gmra.mrb[0].mxu0 %v1350
        %v1412 = vpop.f32.mrb[0].mxu0
        %v1413 = vadd.f32 %v1332, %v1412
        %v1414 = vpop.f32.mrb[0].mxu0
        %v1415 = vpop.f32.mrb[0].mxu0
        %v1416 = vadd.f32 %v1332, %v1415
        %v1417 = vpop.f32.mrb[0].mxu0
        %1418 = vmatprep.mubr.bf16.mxu0 0
        %1419 = vmatmul.mubr.bf16.gmra.mrb[0].mxu0 %v1353
        %v1420 = vpop.f32.mrb[0].mxu0
        %v1421 = vadd.f32 %v1332, %v1420
        %v1422 = vpop.f32.mrb[0].mxu0
        %v1423 = vpop.f32.mrb[0].mxu0
        %v1424 = vadd.f32 %v1332, %v1423
        %v1425 = vpop.f32.mrb[0].mxu0
        %1426 = vmatprep.mubr.bf16.mxu0 0
        %1427 = vmatmul.mubr.bf16.gmra.mrb[0].mxu0 %v1356
        %v1428 = vpop.f32.mrb[0].mxu0
        %v1429 = vadd.f32 %v1332, %v1428
        %v1430 = vpop.f32.mrb[0].mxu0
        %v1431 = vpop.f32.mrb[0].mxu0
        %v1432 = vadd.f32 %v1332, %v1431
        %v1433 = vpop.f32.mrb[0].mxu0
        %1434 = vmatprep.mubr.bf16.mxu0 0
        %1435 = vmatmul.mubr.bf16.gmra.mrb[0].mxu0 %v1359
        %v1436 = vpop.f32.mrb[0].mxu0
        %v1437 = vadd.f32 %v1332, %v1436
        %v1438 = vpop.f32.mrb[0].mxu0
        %v1439 = vpop.f32.mrb[0].mxu0
        %v1440 = vadd.f32 %v1332, %v1439
        %v1441 = vpop.f32.mrb[0].mxu0
        %1442 = vmatprep.mubr.bf16.mxu0 0
        %1443 = vmatmul.mubr.bf16.gmra.mrb[0].mxu0 %v1362
        %v1444 = vpop.f32.mrb[0].mxu0
        %v1445 = vadd.f32 %v1332, %v1444
        %v1446 = vpop.f32.mrb[0].mxu0
        %v1447 = vpop.f32.mrb[0].mxu0
        %v1448 = vadd.f32 %v1332, %v1447
        %v1449 = vpop.f32.mrb[0].mxu0
        %1450 = vmatprep.mubr.bf16.mxu0 0
        %1451 = vmatmul.mubr.bf16.gmra.mrb[0].mxu0 %v1365
        %v1452 = vpop.f32.mrb[0].mxu0
        %v1453 = vadd.f32 %v1332, %v1452
        %v1454 = vpop.f32.mrb[0].mxu0
        %v1455 = vpop.f32.mrb[0].mxu0
        %v1456 = vadd.f32 %v1332, %v1455
        %v1457 = vpop.f32.mrb[0].mxu0
        %1458 = vmatprep.mubr.bf16.mxu0 0
        %1459 = vmatmul.mubr.bf16.gmra.mrb[0].mxu0 %v1368
        %v1460 = vpop.f32.mrb[0].mxu0
        %v1461 = vadd.f32 %v1332, %v1460
        %v1462 = vpop.f32.mrb[0].mxu0
        %v1463 = vpop.f32.mrb[0].mxu0
        %v1464 = vadd.f32 %v1332, %v1463
        %v1465 = vpop.f32.mrb[0].mxu0
        %1466 = vdwg.mxu0
        %v1467 = vadd.f32 %v994, %v1405
        %v1468 = vadd.f32 %v997, %v1408
        %v1469 = vadd.f32 %v994, %v1413
        %v1470 = vadd.f32 %v997, %v1416
        %v1471 = vadd.f32 %v994, %v1421
        %v1472 = vadd.f32 %v997, %v1424
        %v1473 = vadd.f32 %v994, %v1429
        %v1474 = vadd.f32 %v997, %v1432
        %v1475 = vadd.f32 %v994, %v1437
        %v1476 = vadd.f32 %v997, %v1440
        %v1477 = vadd.f32 %v994, %v1445
        %v1478 = vadd.f32 %v997, %v1448
        %v1479 = vadd.f32 %v994, %v1453
        %v1480 = vadd.f32 %v997, %v1456
        %v1481 = vadd.f32 %v994, %v1461
        %v1482 = vadd.f32 %v997, %v1464
        %v1483 = vadd.f32 %v1187, %v1405
        %v1484 = vadd.f32 %v1188, %v1408
        %v1485 = vadd.f32 %v1205, %v1413
        %v1486 = vadd.f32 %v1206, %v1416
        %v1487 = vadd.f32 %v1223, %v1421
        %v1488 = vadd.f32 %v1224, %v1424
        %v1489 = vadd.f32 %v1241, %v1429
        %v1490 = vadd.f32 %v1242, %v1432
        %v1491 = vadd.f32 %v1259, %v1437
        %v1492 = vadd.f32 %v1260, %v1440
        %v1493 = vadd.f32 %v1277, %v1445
        %v1494 = vadd.f32 %v1278, %v1448
        %v1495 = vadd.f32 %v1295, %v1453
        %v1496 = vadd.f32 %v1296, %v1456
        %v1497 = vadd.f32 %v1313, %v1461
        %v1498 = vadd.f32 %v1314, %v1464
        %v1499 = vpack.c.bf16 %v1484, %v1483
        %v1500 = vpack.c.bf16 %v1486, %v1485
        %v1501 = vpack.c.bf16 %v1488, %v1487
        %v1502 = vpack.c.bf16 %v1490, %v1489
        %v1503 = vpack.c.bf16 %v1492, %v1491
        %v1504 = vpack.c.bf16 %v1494, %v1493
        %v1505 = vpack.c.bf16 %v1496, %v1495
        %v1506 = vpack.c.bf16 %v1498, %v1497
        %v1507 = vld [vmem:[#allocation11] sm:$0xf]
        %v1508 = vld [vmem:[#allocation11 + $0x4] sm:$0xf]
        %v1509 = vld [vmem:[#allocation11 + $0x8] sm:$0xf]
        %v1510 = vld [vmem:[#allocation11 + $0xc] sm:$0xf]
        %v1511 = vld [vmem:[#allocation13] sm:$0x1]
        %v1513 = vlaneseq
        %v1514 = vshrl.u32 %v1513, 7
        %v1515 = vsub.s32 0, %v1514
        %v1516 = vrot.slane %v1511, %v1515
        %v1522 = vunpack.c.l.b16 %v1507
        %v1523 = vunpack.c.l.b16 %v1508
        %v1524 = vunpack.c.l.b16 %v1509
        %v1525 = vunpack.c.l.b16 %v1510
        %v1526 = vpack.c.b16 %v1523, %v1522
        %v1527 = vpack.c.b16 %v1525, %v1524
        %v1531 = vsel %vm793, %v1499, 0
        %v1534 = vsel %vm793, %v1500, 0
        %v1537 = vsel %vm793, %v1501, 0
        %v1540 = vsel %vm793, %v1502, 0
        %v1543 = vsel %vm793, %v1503, 0
        %v1546 = vsel %vm793, %v1504, 0
        %v1549 = vsel %vm793, %v1505, 0
        %v1552 = vsel %vm793, %v1506, 0
        %1554 = vmatprep.subr.bf16.mxu0 0
        %1555 = vmatpush1.bf16.msra.mxu0 %v1526
        %1556 = vmatprep.subr.bf16.mxu0 0
        %1557 = vmatpush1.bf16.msra.mxu0 %v1527
        %1558 = vmatprep.subr.bf16.mxu0 0
        %1559 = vmatpush1.bf16.msra.mxu0 0
        %1560 = vmatprep.subr.bf16.mxu0 0
        %1561 = vmatpush1.bf16.msra.mxu0 0
        %1562 = vmatprep.subr.bf16.mxu0 0
        %1563 = vmatpush1.bf16.msra.mxu0 0
        %1564 = vmatprep.subr.bf16.mxu0 0
        %1565 = vmatpush1.bf16.msra.mxu0 0
        %1566 = vmatprep.subr.bf16.mxu0 0
        %1567 = vmatpush1.bf16.msra.mxu0 0
        %1568 = vmatprep.subr.bf16.mxu0 0
        %1569 = vmatpush1.bf16.msra.mxu0 0
        %1570 = vmatprep.subr.bf16.mxu0 0
        %1571 = vmatpush1.bf16.msra.mxu0 0
        %1572 = vmatprep.subr.bf16.mxu0 0
        %1573 = vmatpush1.bf16.msra.mxu0 0
        %1574 = vmatprep.subr.bf16.mxu0 0
        %1575 = vmatpush1.bf16.msra.mxu0 0
        %1576 = vmatprep.subr.bf16.mxu0 0
        %1577 = vmatpush1.bf16.msra.mxu0 0
        %1578 = vmatprep.subr.bf16.mxu0 0
        %1579 = vmatpush1.bf16.msra.mxu0 0
        %1580 = vmatprep.subr.bf16.mxu0 0
        %1581 = vmatpush1.bf16.msra.mxu0 0
        %1582 = vmatprep.subr.bf16.mxu0 0
        %1583 = vmatpush1.bf16.msra.mxu0 0
        %1584 = vmatprep.subr.bf16.mxu0 0
        %1585 = vmatpush1.bf16.msra.mxu0 0
        %1586 = vmatprep.mubr.bf16.mxu0 0
        %1587 = vmatmul.mubr.bf16.gmra.mrb[0].mxu0 %v1531
        %v1588 = vpop.f32.mrb[0].mxu0
        %v1589 = vadd.f32 %v1516, %v1588
        %v1590 = vpop.f32.mrb[0].mxu0
        %v1591 = vpop.f32.mrb[0].mxu0
        %v1592 = vadd.f32 %v1516, %v1591
        %v1593 = vpop.f32.mrb[0].mxu0
        %1594 = vmatprep.mubr.bf16.mxu0 0
        %1595 = vmatmul.mubr.bf16.gmra.mrb[0].mxu0 %v1534
        %v1596 = vpop.f32.mrb[0].mxu0
        %v1597 = vadd.f32 %v1516, %v1596
        %v1598 = vpop.f32.mrb[0].mxu0
        %v1599 = vpop.f32.mrb[0].mxu0
        %v1600 = vadd.f32 %v1516, %v1599
        %v1601 = vpop.f32.mrb[0].mxu0
        %1602 = vmatprep.mubr.bf16.mxu0 0
        %1603 = vmatmul.mubr.bf16.gmra.mrb[0].mxu0 %v1537
        %v1604 = vpop.f32.mrb[0].mxu0
        %v1605 = vadd.f32 %v1516, %v1604
        %v1606 = vpop.f32.mrb[0].mxu0
        %v1607 = vpop.f32.mrb[0].mxu0
        %v1608 = vadd.f32 %v1516, %v1607
        %v1609 = vpop.f32.mrb[0].mxu0
        %1610 = vmatprep.mubr.bf16.mxu0 0
        %1611 = vmatmul.mubr.bf16.gmra.mrb[0].mxu0 %v1540
        %v1612 = vpop.f32.mrb[0].mxu0
        %v1613 = vadd.f32 %v1516, %v1612
        %v1614 = vpop.f32.mrb[0].mxu0
        %v1615 = vpop.f32.mrb[0].mxu0
        %v1616 = vadd.f32 %v1516, %v1615
        %v1617 = vpop.f32.mrb[0].mxu0
        %1618 = vmatprep.mubr.bf16.mxu0 0
        %1619 = vmatmul.mubr.bf16.gmra.mrb[0].mxu0 %v1543
        %v1620 = vpop.f32.mrb[0].mxu0
        %v1621 = vadd.f32 %v1516, %v1620
        %v1622 = vpop.f32.mrb[0].mxu0
        %v1623 = vpop.f32.mrb[0].mxu0
        %v1624 = vadd.f32 %v1516, %v1623
        %v1625 = vpop.f32.mrb[0].mxu0
        %1626 = vmatprep.mubr.bf16.mxu0 0
        %1627 = vmatmul.mubr.bf16.gmra.mrb[0].mxu0 %v1546
        %v1628 = vpop.f32.mrb[0].mxu0
        %v1629 = vadd.f32 %v1516, %v1628
        %v1630 = vpop.f32.mrb[0].mxu0
        %v1631 = vpop.f32.mrb[0].mxu0
        %v1632 = vadd.f32 %v1516, %v1631
        %v1633 = vpop.f32.mrb[0].mxu0
        %1634 = vmatprep.mubr.bf16.mxu0 0
        %1635 = vmatmul.mubr.bf16.gmra.mrb[0].mxu0 %v1549
        %v1636 = vpop.f32.mrb[0].mxu0
        %v1637 = vadd.f32 %v1516, %v1636
        %v1638 = vpop.f32.mrb[0].mxu0
        %v1639 = vpop.f32.mrb[0].mxu0
        %v1640 = vadd.f32 %v1516, %v1639
        %v1641 = vpop.f32.mrb[0].mxu0
        %1642 = vmatprep.mubr.bf16.mxu0 0
        %1643 = vmatmul.mubr.bf16.gmra.mrb[0].mxu0 %v1552
        %v1644 = vpop.f32.mrb[0].mxu0
        %v1645 = vadd.f32 %v1516, %v1644
        %v1646 = vpop.f32.mrb[0].mxu0
        %v1647 = vpop.f32.mrb[0].mxu0
        %v1648 = vadd.f32 %v1516, %v1647
        %v1649 = vpop.f32.mrb[0].mxu0
        %1650 = vdwg.mxu0
        %v1651 = vmax.f32 %v1589, 0.0
        %v1652 = vmax.f32 %v1592, 0.0
        %v1653 = vmax.f32 %v1597, 0.0
        %v1654 = vmax.f32 %v1600, 0.0
        %v1655 = vmax.f32 %v1605, 0.0
        %v1656 = vmax.f32 %v1608, 0.0
        %v1657 = vmax.f32 %v1613, 0.0
        %v1658 = vmax.f32 %v1616, 0.0
        %v1659 = vmax.f32 %v1621, 0.0
        %v1660 = vmax.f32 %v1624, 0.0
        %v1661 = vmax.f32 %v1629, 0.0
        %v1662 = vmax.f32 %v1632, 0.0
        %v1663 = vmax.f32 %v1637, 0.0
        %v1664 = vmax.f32 %v1640, 0.0
        %v1665 = vmax.f32 %v1645, 0.0
        %v1666 = vmax.f32 %v1648, 0.0
        %v1667 = vpack.c.bf16 %v1652, %v1651
        %v1668 = vpack.c.bf16 %v1654, %v1653
        %v1669 = vpack.c.bf16 %v1656, %v1655
        %v1670 = vpack.c.bf16 %v1658, %v1657
        %v1671 = vpack.c.bf16 %v1660, %v1659
        %v1672 = vpack.c.bf16 %v1662, %v1661
        %v1673 = vpack.c.bf16 %v1664, %v1663
        %v1674 = vpack.c.bf16 %v1666, %v1665
        %v1675 = vld [vmem:[%s15] sm:$0xf]
        %v1676 = vld [vmem:[%s15 + $0x4] sm:$0xf]
        %v1677 = vld [vmem:[%s15 + $0x8] sm:$0xf]
        %v1678 = vld [vmem:[%s15 + $0xc] sm:$0xf]
        %v1679 = vld [vmem:[%s15 + $0x10] sm:$0xf]
        %v1680 = vld [vmem:[%s15 + $0x14] sm:$0xf]
        %v1681 = vld [vmem:[%s15 + $0x18] sm:$0xf]
        %v1682 = vld [vmem:[%s15 + $0x1c] sm:$0xf]
        %v1683 = vld [vmem:[%s16] sm:$0x1]
        %v1685 = vlaneseq
        %v1686 = vshrl.u32 %v1685, 7
        %v1687 = vsub.s32 0, %v1686
        %v1688 = vrot.slane %v1683, %v1687
        %v1698 = vunpack.c.l.b16 %v1675
        %v1699 = vunpack.c.l.b16 %v1676
        %v1700 = vunpack.c.l.b16 %v1677
        %v1701 = vunpack.c.l.b16 %v1678
        %v1702 = vunpack.c.l.b16 %v1679
        %v1703 = vunpack.c.l.b16 %v1680
        %v1704 = vunpack.c.l.b16 %v1681
        %v1705 = vunpack.c.l.b16 %v1682
        %v1706 = vpack.c.b16 %v1699, %v1698
        %v1707 = vpack.c.b16 %v1701, %v1700
        %v1708 = vpack.c.b16 %v1703, %v1702
        %v1709 = vpack.c.b16 %v1705, %v1704
        %vm1714 = vcmask 523264
        %v1716 = vsel %vm1714, %v1667, 0
        %v1719 = vsel %vm1714, %v1668, 0
        %v1722 = vsel %vm1714, %v1669, 0
        %v1725 = vsel %vm1714, %v1670, 0
        %v1728 = vsel %vm1714, %v1671, 0
        %v1731 = vsel %vm1714, %v1672, 0
        %v1734 = vsel %vm1714, %v1673, 0
        %v1737 = vsel %vm1714, %v1674, 0
        %1739 = vmatprep.subr.bf16.mxu0 0
        %1740 = vmatpush1.bf16.msra.mxu0 %v1706
        %1741 = vmatprep.subr.bf16.mxu0 0
        %1742 = vmatpush1.bf16.msra.mxu0 %v1707
        %1743 = vmatprep.subr.bf16.mxu0 0
        %1744 = vmatpush1.bf16.msra.mxu0 %v1708
        %1745 = vmatprep.subr.bf16.mxu0 0
        %1746 = vmatpush1.bf16.msra.mxu0 %v1709
        %1747 = vmatprep.subr.bf16.mxu0 0
        %1748 = vmatpush1.bf16.msra.mxu0 0
        %1749 = vmatprep.subr.bf16.mxu0 0
        %1750 = vmatpush1.bf16.msra.mxu0 0
        %1751 = vmatprep.subr.bf16.mxu0 0
        %1752 = vmatpush1.bf16.msra.mxu0 0
        %1753 = vmatprep.subr.bf16.mxu0 0
        %1754 = vmatpush1.bf16.msra.mxu0 0
        %1755 = vmatprep.subr.bf16.mxu0 0
        %1756 = vmatpush1.bf16.msra.mxu0 0
        %1757 = vmatprep.subr.bf16.mxu0 0
        %1758 = vmatpush1.bf16.msra.mxu0 0
        %1759 = vmatprep.subr.bf16.mxu0 0
        %1760 = vmatpush1.bf16.msra.mxu0 0
        %1761 = vmatprep.subr.bf16.mxu0 0
        %1762 = vmatpush1.bf16.msra.mxu0 0
        %1763 = vmatprep.subr.bf16.mxu0 0
        %1764 = vmatpush1.bf16.msra.mxu0 0
        %1765 = vmatprep.subr.bf16.mxu0 0
        %1766 = vmatpush1.bf16.msra.mxu0 0
        %1767 = vmatprep.subr.bf16.mxu0 0
        %1768 = vmatpush1.bf16.msra.mxu0 0
        %1769 = vmatprep.subr.bf16.mxu0 0
        %1770 = vmatpush1.bf16.msra.mxu0 0
        %1771 = vmatprep.mubr.bf16.mxu0 0
        %1772 = vmatmul.mubr.bf16.gmra.mrb[0].mxu0 %v1716
        %v1773 = vpop.f32.mrb[0].mxu0
        %v1774 = vadd.f32 %v1688, %v1773
        %v1775 = vpop.f32.mrb[0].mxu0
        %v1776 = vpop.f32.mrb[0].mxu0
        %v1777 = vadd.f32 %v1688, %v1776
        %v1778 = vpop.f32.mrb[0].mxu0
        %1779 = vmatprep.mubr.bf16.mxu0 0
        %1780 = vmatmul.mubr.bf16.gmra.mrb[0].mxu0 %v1719
        %v1781 = vpop.f32.mrb[0].mxu0
        %v1782 = vadd.f32 %v1688, %v1781
        %v1783 = vpop.f32.mrb[0].mxu0
        %v1784 = vpop.f32.mrb[0].mxu0
        %v1785 = vadd.f32 %v1688, %v1784
        %v1786 = vpop.f32.mrb[0].mxu0
        %1787 = vmatprep.mubr.bf16.mxu0 0
        %1788 = vmatmul.mubr.bf16.gmra.mrb[0].mxu0 %v1722
        %v1789 = vpop.f32.mrb[0].mxu0
        %v1790 = vadd.f32 %v1688, %v1789
        %v1791 = vpop.f32.mrb[0].mxu0
        %v1792 = vpop.f32.mrb[0].mxu0
        %v1793 = vadd.f32 %v1688, %v1792
        %v1794 = vpop.f32.mrb[0].mxu0
        %1795 = vmatprep.mubr.bf16.mxu0 0
        %1796 = vmatmul.mubr.bf16.gmra.mrb[0].mxu0 %v1725
        %v1797 = vpop.f32.mrb[0].mxu0
        %v1798 = vadd.f32 %v1688, %v1797
        %v1799 = vpop.f32.mrb[0].mxu0
        %v1800 = vpop.f32.mrb[0].mxu0
        %v1801 = vadd.f32 %v1688, %v1800
        %v1802 = vpop.f32.mrb[0].mxu0
        %1803 = vmatprep.mubr.bf16.mxu0 0
        %1804 = vmatmul.mubr.bf16.gmra.mrb[0].mxu0 %v1728
        %v1805 = vpop.f32.mrb[0].mxu0
        %v1806 = vadd.f32 %v1688, %v1805
        %v1807 = vpop.f32.mrb[0].mxu0
        %v1808 = vpop.f32.mrb[0].mxu0
        %v1809 = vadd.f32 %v1688, %v1808
        %v1810 = vpop.f32.mrb[0].mxu0
        %1811 = vmatprep.mubr.bf16.mxu0 0
        %1812 = vmatmul.mubr.bf16.gmra.mrb[0].mxu0 %v1731
        %v1813 = vpop.f32.mrb[0].mxu0
        %v1814 = vadd.f32 %v1688, %v1813
        %v1815 = vpop.f32.mrb[0].mxu0
        %v1816 = vpop.f32.mrb[0].mxu0
        %v1817 = vadd.f32 %v1688, %v1816
        %v1818 = vpop.f32.mrb[0].mxu0
        %1819 = vmatprep.mubr.bf16.mxu0 0
        %1820 = vmatmul.mubr.bf16.gmra.mrb[0].mxu0 %v1734
        %v1821 = vpop.f32.mrb[0].mxu0
        %v1822 = vadd.f32 %v1688, %v1821
        %v1823 = vpop.f32.mrb[0].mxu0
        %v1824 = vpop.f32.mrb[0].mxu0
        %v1825 = vadd.f32 %v1688, %v1824
        %v1826 = vpop.f32.mrb[0].mxu0
        %1827 = vmatprep.mubr.bf16.mxu0 0
        %1828 = vmatmul.mubr.bf16.gmra.mrb[0].mxu0 %v1737
        %v1829 = vpop.f32.mrb[0].mxu0
        %v1830 = vadd.f32 %v1688, %v1829
        %v1831 = vpop.f32.mrb[0].mxu0
        %v1832 = vpop.f32.mrb[0].mxu0
        %v1833 = vadd.f32 %v1688, %v1832
        %v1834 = vpop.f32.mrb[0].mxu0
        %1835 = vdwg.mxu0
        %v1836 = vsel %vm793, %v1774, -inf
        %v1837 = vsel %vm793, %v1777, -inf
        %v1838 = vmax.f32 %v1836, %v1837
        %v1839 = vrot.slane %v1838, 4
        %v1840 = vmax.f32 %v1838, %v1839
        %v1841 = vrot.slane %v1840, 2
        %v1842 = vmax.f32 %v1840, %v1841
        %v1843 = vrot.slane %v1842, 1
        %v1844 = vmax.f32 %v1842, %v1843
        %v1845 = vsub.f32 %v1774, %v1844
        %v1846 = vsub.f32 %v1777, %v1844
        %v1847 = vmul.f32 %v1845, 1.442695
        %v1848 = vpow.pop %v1847
        %v1849 = vmul.f32 %v1846, 1.442695
        %v1850 = vpow.pop %v1849
        %v1851 = vsel %vm793, %v1848, 0.0
        %v1852 = vsel %vm793, %v1850, 0.0
        %v1853 = vadd.f32 %v1851, %v1852
        %v1854 = vrot.slane %v1853, 4
        %v1855 = vadd.f32 %v1853, %v1854
        %v1856 = vrot.slane %v1855, 2
        %v1857 = vadd.f32 %v1855, %v1856
        %v1858 = vrot.slane %v1857, 1
        %v1859 = vadd.f32 %v1857, %v1858
        %v1860 = vrcp.pop %v1859
        %v1861 = vmul.f32 %v1848, %v1860
        %v1862 = vmul.f32 %v1850, %v1860
        %v1863 = vmul.f32 %v1861, %v1467
        %v1864 = vmul.f32 %v1862, %v1468
        %v1865 = vsel %vm793, %v1863, 0.0
        %v1866 = vsel %vm793, %v1864, 0.0
        %v1867 = vadd.f32 %v1865, %v1866
        %v1868 = vrot.slane %v1867, 4
        %v1869 = vadd.f32 %v1867, %v1868
        %v1870 = vrot.slane %v1869, 2
        %v1871 = vadd.f32 %v1869, %v1870
        %v1872 = vrot.slane %v1871, 1
        %v1873 = vadd.f32 %v1871, %v1872
        %vm1874 = vcmask 253952
        %1875 = vst.msk [vmem:[#allocation4] sm:$0x1] %vm1874, %v1873
        %v1876 = vsel %vm793, %v1782, -inf
        %v1877 = vsel %vm793, %v1785, -inf
        %v1878 = vmax.f32 %v1876, %v1877
        %v1879 = vrot.slane %v1878, 4
        %v1880 = vmax.f32 %v1878, %v1879
        %v1881 = vrot.slane %v1880, 2
        %v1882 = vmax.f32 %v1880, %v1881
        %v1883 = vrot.slane %v1882, 1
        %v1884 = vmax.f32 %v1882, %v1883
        %v1885 = vsub.f32 %v1782, %v1884
        %v1886 = vsub.f32 %v1785, %v1884
        %v1887 = vmul.f32 %v1885, 1.442695
        %v1888 = vpow.pop %v1887
        %v1889 = vmul.f32 %v1886, 1.442695
        %v1890 = vpow.pop %v1889
        %v1891 = vsel %vm793, %v1888, 0.0
        %v1892 = vsel %vm793, %v1890, 0.0
        %v1893 = vadd.f32 %v1891, %v1892
        %v1894 = vrot.slane %v1893, 4
        %v1895 = vadd.f32 %v1893, %v1894
        %v1896 = vrot.slane %v1895, 2
        %v1897 = vadd.f32 %v1895, %v1896
        %v1898 = vrot.slane %v1897, 1
        %v1899 = vadd.f32 %v1897, %v1898
        %v1900 = vrcp.pop %v1899
        %v1901 = vmul.f32 %v1888, %v1900
        %v1902 = vmul.f32 %v1890, %v1900
        %v1903 = vmul.f32 %v1901, %v1469
        %v1904 = vmul.f32 %v1902, %v1470
        %v1905 = vsel %vm793, %v1903, 0.0
        %v1906 = vsel %vm793, %v1904, 0.0
        %v1907 = vadd.f32 %v1905, %v1906
        %v1908 = vrot.slane %v1907, 4
        %v1909 = vadd.f32 %v1907, %v1908
        %v1910 = vrot.slane %v1909, 2
        %v1911 = vadd.f32 %v1909, %v1910
        %v1912 = vrot.slane %v1911, 1
        %v1913 = vadd.f32 %v1911, %v1912
        %1914 = vst.msk [vmem:[#allocation4 + $0x1] sm:$0x1] %vm1874, %v1913
        %v1915 = vsel %vm793, %v1790, -inf
        %v1916 = vsel %vm793, %v1793, -inf
        %v1917 = vmax.f32 %v1915, %v1916
        %v1918 = vrot.slane %v1917, 4
        %v1919 = vmax.f32 %v1917, %v1918
        %v1920 = vrot.slane %v1919, 2
        %v1921 = vmax.f32 %v1919, %v1920
        %v1922 = vrot.slane %v1921, 1
        %v1923 = vmax.f32 %v1921, %v1922
        %v1924 = vsub.f32 %v1790, %v1923
        %v1925 = vsub.f32 %v1793, %v1923
        %v1926 = vmul.f32 %v1924, 1.442695
        %v1927 = vpow.pop %v1926
        %v1928 = vmul.f32 %v1925, 1.442695
        %v1929 = vpow.pop %v1928
        %v1930 = vsel %vm793, %v1927, 0.0
        %v1931 = vsel %vm793, %v1929, 0.0
        %v1932 = vadd.f32 %v1930, %v1931
        %v1933 = vrot.slane %v1932, 4
        %v1934 = vadd.f32 %v1932, %v1933
        %v1935 = vrot.slane %v1934, 2
        %v1936 = vadd.f32 %v1934, %v1935
        %v1937 = vrot.slane %v1936, 1
        %v1938 = vadd.f32 %v1936, %v1937
        %v1939 = vrcp.pop %v1938
        %v1940 = vmul.f32 %v1927, %v1939
        %v1941 = vmul.f32 %v1929, %v1939
        %v1942 = vmul.f32 %v1940, %v1471
        %v1943 = vmul.f32 %v1941, %v1472
        %v1944 = vsel %vm793, %v1942, 0.0
        %v1945 = vsel %vm793, %v1943, 0.0
        %v1946 = vadd.f32 %v1944, %v1945
        %v1947 = vrot.slane %v1946, 4
        %v1948 = vadd.f32 %v1946, %v1947
        %v1949 = vrot.slane %v1948, 2
        %v1950 = vadd.f32 %v1948, %v1949
        %v1951 = vrot.slane %v1950, 1
        %v1952 = vadd.f32 %v1950, %v1951
        %1953 = vst.msk [vmem:[#allocation4 + $0x2] sm:$0x1] %vm1874, %v1952
        %v1954 = vsel %vm793, %v1798, -inf
        %v1955 = vsel %vm793, %v1801, -inf
        %v1956 = vmax.f32 %v1954, %v1955
        %v1957 = vrot.slane %v1956, 4
        %v1958 = vmax.f32 %v1956, %v1957
        %v1959 = vrot.slane %v1958, 2
        %v1960 = vmax.f32 %v1958, %v1959
        %v1961 = vrot.slane %v1960, 1
        %v1962 = vmax.f32 %v1960, %v1961
        %v1963 = vsub.f32 %v1798, %v1962
        %v1964 = vsub.f32 %v1801, %v1962
        %v1965 = vmul.f32 %v1963, 1.442695
        %v1966 = vpow.pop %v1965
        %v1967 = vmul.f32 %v1964, 1.442695
        %v1968 = vpow.pop %v1967
        %v1969 = vsel %vm793, %v1966, 0.0
        %v1970 = vsel %vm793, %v1968, 0.0
        %v1971 = vadd.f32 %v1969, %v1970
        %v1972 = vrot.slane %v1971, 4
        %v1973 = vadd.f32 %v1971, %v1972
        %v1974 = vrot.slane %v1973, 2
        %v1975 = vadd.f32 %v1973, %v1974
        %v1976 = vrot.slane %v1975, 1
        %v1977 = vadd.f32 %v1975, %v1976
        %v1978 = vrcp.pop %v1977
        %v1979 = vmul.f32 %v1966, %v1978
        %v1980 = vmul.f32 %v1968, %v1978
        %v1981 = vmul.f32 %v1979, %v1473
        %v1982 = vmul.f32 %v1980, %v1474
        %v1983 = vsel %vm793, %v1981, 0.0
        %v1984 = vsel %vm793, %v1982, 0.0
        %v1985 = vadd.f32 %v1983, %v1984
        %v1986 = vrot.slane %v1985, 4
        %v1987 = vadd.f32 %v1985, %v1986
        %v1988 = vrot.slane %v1987, 2
        %v1989 = vadd.f32 %v1987, %v1988
        %v1990 = vrot.slane %v1989, 1
        %v1991 = vadd.f32 %v1989, %v1990
        %1992 = vst.msk [vmem:[#allocation4 + $0x3] sm:$0x1] %vm1874, %v1991
        %v1993 = vsel %vm793, %v1806, -inf
        %v1994 = vsel %vm793, %v1809, -inf
        %v1995 = vmax.f32 %v1993, %v1994
        %v1996 = vrot.slane %v1995, 4
        %v1997 = vmax.f32 %v1995, %v1996
        %v1998 = vrot.slane %v1997, 2
        %v1999 = vmax.f32 %v1997, %v1998
        %v2000 = vrot.slane %v1999, 1
        %v2001 = vmax.f32 %v1999, %v2000
        %v2002 = vsub.f32 %v1806, %v2001
        %v2003 = vsub.f32 %v1809, %v2001
        %v2004 = vmul.f32 %v2002, 1.442695
        %v2005 = vpow.pop %v2004
        %v2006 = vmul.f32 %v2003, 1.442695
        %v2007 = vpow.pop %v2006
        %v2008 = vsel %vm793, %v2005, 0.0
        %v2009 = vsel %vm793, %v2007, 0.0
        %v2010 = vadd.f32 %v2008, %v2009
        %v2011 = vrot.slane %v2010, 4
        %v2012 = vadd.f32 %v2010, %v2011
        %v2013 = vrot.slane %v2012, 2
        %v2014 = vadd.f32 %v2012, %v2013
        %v2015 = vrot.slane %v2014, 1
        %v2016 = vadd.f32 %v2014, %v2015
        %v2017 = vrcp.pop %v2016
        %v2018 = vmul.f32 %v2005, %v2017
        %v2019 = vmul.f32 %v2007, %v2017
        %v2020 = vmul.f32 %v2018, %v1475
        %v2021 = vmul.f32 %v2019, %v1476
        %v2022 = vsel %vm793, %v2020, 0.0
        %v2023 = vsel %vm793, %v2021, 0.0
        %v2024 = vadd.f32 %v2022, %v2023
        %v2025 = vrot.slane %v2024, 4
        %v2026 = vadd.f32 %v2024, %v2025
        %v2027 = vrot.slane %v2026, 2
        %v2028 = vadd.f32 %v2026, %v2027
        %v2029 = vrot.slane %v2028, 1
        %v2030 = vadd.f32 %v2028, %v2029
        %2031 = vst.msk [vmem:[#allocation4 + $0x4] sm:$0x1] %vm1874, %v2030
        %v2032 = vsel %vm793, %v1814, -inf
        %v2033 = vsel %vm793, %v1817, -inf
        %v2034 = vmax.f32 %v2032, %v2033
        %v2035 = vrot.slane %v2034, 4
        %v2036 = vmax.f32 %v2034, %v2035
        %v2037 = vrot.slane %v2036, 2
        %v2038 = vmax.f32 %v2036, %v2037
        %v2039 = vrot.slane %v2038, 1
        %v2040 = vmax.f32 %v2038, %v2039
        %v2041 = vsub.f32 %v1814, %v2040
        %v2042 = vsub.f32 %v1817, %v2040
        %v2043 = vmul.f32 %v2041, 1.442695
        %v2044 = vpow.pop %v2043
        %v2045 = vmul.f32 %v2042, 1.442695
        %v2046 = vpow.pop %v2045
        %v2047 = vsel %vm793, %v2044, 0.0
        %v2048 = vsel %vm793, %v2046, 0.0
        %v2049 = vadd.f32 %v2047, %v2048
        %v2050 = vrot.slane %v2049, 4
        %v2051 = vadd.f32 %v2049, %v2050
        %v2052 = vrot.slane %v2051, 2
        %v2053 = vadd.f32 %v2051, %v2052
        %v2054 = vrot.slane %v2053, 1
        %v2055 = vadd.f32 %v2053, %v2054
        %v2056 = vrcp.pop %v2055
        %v2057 = vmul.f32 %v2044, %v2056
        %v2058 = vmul.f32 %v2046, %v2056
        %v2059 = vmul.f32 %v2057, %v1477
        %v2060 = vmul.f32 %v2058, %v1478
        %v2061 = vsel %vm793, %v2059, 0.0
        %v2062 = vsel %vm793, %v2060, 0.0
        %v2063 = vadd.f32 %v2061, %v2062
        %v2064 = vrot.slane %v2063, 4
        %v2065 = vadd.f32 %v2063, %v2064
        %v2066 = vrot.slane %v2065, 2
        %v2067 = vadd.f32 %v2065, %v2066
        %v2068 = vrot.slane %v2067, 1
        %v2069 = vadd.f32 %v2067, %v2068
        %2070 = vst.msk [vmem:[#allocation4 + $0x5] sm:$0x1] %vm1874, %v2069
        %v2071 = vsel %vm793, %v1822, -inf
        %v2072 = vsel %vm793, %v1825, -inf
        %v2073 = vmax.f32 %v2071, %v2072
        %v2074 = vrot.slane %v2073, 4
        %v2075 = vmax.f32 %v2073, %v2074
        %v2076 = vrot.slane %v2075, 2
        %v2077 = vmax.f32 %v2075, %v2076
        %v2078 = vrot.slane %v2077, 1
        %v2079 = vmax.f32 %v2077, %v2078
        %v2080 = vsub.f32 %v1822, %v2079
        %v2081 = vsub.f32 %v1825, %v2079
        %v2082 = vmul.f32 %v2080, 1.442695
        %v2083 = vpow.pop %v2082
        %v2084 = vmul.f32 %v2081, 1.442695
        %v2085 = vpow.pop %v2084
        %v2086 = vsel %vm793, %v2083, 0.0
        %v2087 = vsel %vm793, %v2085, 0.0
        %v2088 = vadd.f32 %v2086, %v2087
        %v2089 = vrot.slane %v2088, 4
        %v2090 = vadd.f32 %v2088, %v2089
        %v2091 = vrot.slane %v2090, 2
        %v2092 = vadd.f32 %v2090, %v2091
        %v2093 = vrot.slane %v2092, 1
        %v2094 = vadd.f32 %v2092, %v2093
        %v2095 = vrcp.pop %v2094
        %v2096 = vmul.f32 %v2083, %v2095
        %v2097 = vmul.f32 %v2085, %v2095
        %v2098 = vmul.f32 %v2096, %v1479
        %v2099 = vmul.f32 %v2097, %v1480
        %v2100 = vsel %vm793, %v2098, 0.0
        %v2101 = vsel %vm793, %v2099, 0.0
        %v2102 = vadd.f32 %v2100, %v2101
        %v2103 = vrot.slane %v2102, 4
        %v2104 = vadd.f32 %v2102, %v2103
        %v2105 = vrot.slane %v2104, 2
        %v2106 = vadd.f32 %v2104, %v2105
        %v2107 = vrot.slane %v2106, 1
        %v2108 = vadd.f32 %v2106, %v2107
        %2109 = vst.msk [vmem:[#allocation4 + $0x6] sm:$0x1] %vm1874, %v2108
        %v2110 = vsel %vm793, %v1830, -inf
        %v2111 = vsel %vm793, %v1833, -inf
        %v2112 = vmax.f32 %v2110, %v2111
        %v2113 = vrot.slane %v2112, 4
        %v2114 = vmax.f32 %v2112, %v2113
        %v2115 = vrot.slane %v2114, 2
        %v2116 = vmax.f32 %v2114, %v2115
        %v2117 = vrot.slane %v2116, 1
        %v2118 = vmax.f32 %v2116, %v2117
        %v2119 = vsub.f32 %v1830, %v2118
        %v2120 = vsub.f32 %v1833, %v2118
        %v2121 = vmul.f32 %v2119, 1.442695
        %v2122 = vpow.pop %v2121
        %v2123 = vmul.f32 %v2120, 1.442695
        %v2124 = vpow.pop %v2123
        %v2125 = vsel %vm793, %v2122, 0.0
        %v2126 = vsel %vm793, %v2124, 0.0
        %v2127 = vadd.f32 %v2125, %v2126
        %v2128 = vrot.slane %v2127, 4
        %v2129 = vadd.f32 %v2127, %v2128
        %v2130 = vrot.slane %v2129, 2
        %v2131 = vadd.f32 %v2129, %v2130
        %v2132 = vrot.slane %v2131, 1
        %v2133 = vadd.f32 %v2131, %v2132
        %v2134 = vrcp.pop %v2133
        %v2135 = vmul.f32 %v2122, %v2134
        %v2136 = vmul.f32 %v2124, %v2134
        %v2137 = vmul.f32 %v2135, %v1481
        %v2138 = vmul.f32 %v2136, %v1482
        %v2139 = vsel %vm793, %v2137, 0.0
        %v2140 = vsel %vm793, %v2138, 0.0
        %v2141 = vadd.f32 %v2139, %v2140
        %v2142 = vrot.slane %v2141, 4
        %v2143 = vadd.f32 %v2141, %v2142
        %v2144 = vrot.slane %v2143, 2
        %v2145 = vadd.f32 %v2143, %v2144
        %v2146 = vrot.slane %v2145, 1
        %v2147 = vadd.f32 %v2145, %v2146
        %2148 = vst.msk [vmem:[#allocation4 + $0x7] sm:$0x1] %vm1874, %v2147
        %v2149 = vld [vmem:[#allocation4] sm:$0xff]
        %v2150 = vpack.c.bf16 %v2149, %v2149
        %v2151 = vld [vmem:[%s17] sm:$0xf]
        %v2152 = vld [vmem:[%s17 + $0x4] sm:$0xf]
        %v2153 = vld [vmem:[%s17 + $0x8] sm:$0xf]
        %v2154 = vld [vmem:[%s17 + $0xc] sm:$0xf]
        %v2159 = vunpack.c.l.b16 %v2151
        %v2160 = vunpack.c.l.b16 %v2152
        %v2161 = vunpack.c.l.b16 %v2153
        %v2162 = vunpack.c.l.b16 %v2154
        %v2163 = vpack.c.b16 %v2160, %v2159
        %v2164 = vpack.c.b16 %v2162, %v2161
        %v2168 = vsel %vm793, %v2150, 0
        %2170 = vmatprep.subr.bf16.mxu0 0
        %2171 = vmatpush1.bf16.msra.mxu0 %v2163
        %2172 = vmatprep.subr.bf16.mxu0 0
        %2173 = vmatpush1.bf16.msra.mxu0 %v2164
        %2174 = vmatprep.subr.bf16.mxu0 0
        %2175 = vmatpush1.bf16.msra.mxu0 0
        %2176 = vmatprep.subr.bf16.mxu0 0
        %2177 = vmatpush1.bf16.msra.mxu0 0
        %2178 = vmatprep.subr.bf16.mxu0 0
        %2179 = vmatpush1.bf16.msra.mxu0 0
        %2180 = vmatprep.subr.bf16.mxu0 0
        %2181 = vmatpush1.bf16.msra.mxu0 0
        %2182 = vmatprep.subr.bf16.mxu0 0
        %2183 = vmatpush1.bf16.msra.mxu0 0
        %2184 = vmatprep.subr.bf16.mxu0 0
        %2185 = vmatpush1.bf16.msra.mxu0 0
        %2186 = vmatprep.subr.bf16.mxu0 0
        %2187 = vmatpush1.bf16.msra.mxu0 0
        %2188 = vmatprep.subr.bf16.mxu0 0
        %2189 = vmatpush1.bf16.msra.mxu0 0
        %2190 = vmatprep.subr.bf16.mxu0 0
        %2191 = vmatpush1.bf16.msra.mxu0 0
        %2192 = vmatprep.subr.bf16.mxu0 0
        %2193 = vmatpush1.bf16.msra.mxu0 0
        %2194 = vmatprep.subr.bf16.mxu0 0
        %2195 = vmatpush1.bf16.msra.mxu0 0
        %2196 = vmatprep.subr.bf16.mxu0 0
        %2197 = vmatpush1.bf16.msra.mxu0 0
        %2198 = vmatprep.subr.bf16.mxu0 0
        %2199 = vmatpush1.bf16.msra.mxu0 0
        %2200 = vmatprep.subr.bf16.mxu0 0
        %2201 = vmatpush1.bf16.msra.mxu0 0
        %2202 = vmatprep.mubr.bf16.mxu0 0
        %2203 = vmatmul.mubr.bf16.gmra.mrb[0].mxu0 %v2168
        %v2204 = vpop.f32.mrb[0].mxu0
        %v2205 = vadd.f32 0.0, %v2204
        %v2206 = vpop.f32.mrb[0].mxu0
        %v2207 = vpop.f32.mrb[0].mxu0
        %v2208 = vpop.f32.mrb[0].mxu0
        %2209 = vdwg.mxu0
        %v2210 = vadd.f32 %v765, %v2205
        %v2211 = vld [vmem:[%s18] sm:$0x1]
        %v2213 = vlaneseq
        %v2214 = vshrl.u32 %v2213, 7
        %v2215 = vsub.s32 0, %v2214
        %v2216 = vrot.slane %v2211, %v2215
        %v2218 = vadd.f32 %v2210, %v2216
        %2219 = vst.msk [vmem:[%s735] sm:$0xff] %vm793, %v2218
        %s2220 = sand.u32 %s481, 1
        %s2221 = scalar_lea.sflag [#allocation7], %s2220
        %s2222 = sand.u32 %s481, 1
        %s2223 = smul.addr %s2222, 8
        %s2224 = scalar_lea.vmem [#allocation14], %s2223
        // Predicated region
        $region117: #{tpu_custom_call.1} parent=95 // pred_check
          %p2225 = pneg %p491
        $region118: #{tpu_custom_call.1} parent=95 // pred_check_branch
          %2227 = sbr.rel (%p2225) target = $region120
        $region119: #{tpu_custom_call.1} parent=95 // pred_region
          %s2229 = ssub.s32 128, 128
          %2230 = vsyncadd %s2221, %s2229
          %s2231 = smul.addr %s40, 2
          %s2232 = sadd.s32 %s41, %s2231
          %s2233 = smul.addr %s2232, 128
          %s2234 = scalar_lea.hbm %s19, %s2233
          %s2236 = sshll.u32 %s2224, 4
          %s2237 = int_to_ptr.vmem [resolvable:$true] %s2236
          %2239 = dma.vmem_to_hbm [thread:$0]  %s2237, 128, %s2234, %s2221
        $region120: #{tpu_custom_call.1} parent=95 // pred_fallthru
          _
      $region96: #{tpu_custom_call.1} parent=5 // pred_fallthru
        _
      %p2240 = scmp.le.s32.totalorder 2, %s31
      // Predicated region
      $region121: #{tpu_custom_call.1} parent=5 // pred_check
        %p2241 = pneg %p2240
      $region122: #{tpu_custom_call.1} parent=5 // pred_check_branch
        %2243 = sbr.rel (%p2241) target = $region124
      $region123: #{tpu_custom_call.1} parent=5 // pred_region
        %s2244 = ssub.s32 %s31, 2
        // Predicated region
        $region125: #{tpu_custom_call.1} parent=123 // pred_check
          %p2245 = pneg %p497
        $region126: #{tpu_custom_call.1} parent=123 // pred_check_branch
          %2247 = sbr.rel (%p2245) target = $region128
        $region127: #{tpu_custom_call.1} parent=123 // pred_region
          %s2248 = sand.u32 %s482, 1
          %s2249 = scalar_lea.sflag [#allocation7], %s2248
          %s2250 = sand.u32 %s482, 1
          %s2251 = smul.addr %s2250, 8
          %s2252 = scalar_lea.vmem [#allocation14], %s2251
          %2253 = dma.done %s2249, 128
        $region128: #{tpu_custom_call.1} parent=123 // pred_fallthru
          _
      $region124: #{tpu_custom_call.1} parent=5 // pred_fallthru
        _
    $region6: #{tpu_custom_call.1} parent=1 // loop_footer
      %s35 = sadd.s32 1, %s31
    $region7: #{tpu_custom_call.1} parent=1 // loop_footer_branch
      %30 = sbr.rel target = $region3
    $region8: #{tpu_custom_call.1} parent=1 // loop_exit
      _
    %2254 = vsyncpa [#allocation6], 1
    %s2255 = scalar_lea.sflag [#allocation6], 1
    %2256 = vsyncpa %s2255, 1
    %2257 = vsyncpa [#allocation9], 1
    %2258 = vsyncpa [#allocation12], 1
    %2259 = vsyncpa [#allocation7], 1
    %s2260 = scalar_lea.sflag [#allocation7], 1
    %2261 = vsyncpa %s2260, 1

</llo_original>
